<compile_context>
chip_gen: v7x
topology: tpu7x:2x2x1
jax: 0.10.0
libtpu: 0.0.40
codegen_flags: <defaults>
</compile_context>

<pallas_src>
import math

import jax
import jax.numpy as jnp
from jax.experimental import pallas as pl
from jax.experimental.pallas import tpu as pltpu


NUM_KERNELS = 6
_KERNEL_SIZES = [(1, 1), (1, 3), (1, 5), (3, 1), (3, 3), (3, 5)]
_PADDINGS = [(0, 0), (0, 1), (0, 2), (1, 0), (1, 1), (1, 2)]

# Per-branch nonzero tap offsets inside the common 3x5 tap grid (halo = 1,2).
_BRANCH_TAPS = []
for (_kh, _kw), (_ph, _pw) in zip(_KERNEL_SIZES, _PADDINGS):
    _BRANCH_TAPS.append([(a - _ph + 1, b - _pw + 2)
                         for a in range(_kh) for b in range(_kw)])
_ALL_TAPS = sorted({t for taps in _BRANCH_TAPS for t in taps})   # 15 windows
# total nonzero taps = 1+3+5+3+9+15 = 36 (vs 90 in the naive full grid)


# ----------------------------------------------------------------------------
# Kernel 1: fused InceptionBlock (6 "same" convs + ReLU + 1x1 aggregation).
# Block layout: [1, Hmax+2, Wmax+4, TN]  (N = B*D on lanes -> lane-dense).
# ----------------------------------------------------------------------------
def _inception_kernel(xpad_ref, convw_ref, convb_ref, aggw_ref, aggb_ref, out_ref):
    _, H, W, TN = out_ref.shape
    branch_acc = [None] * NUM_KERNELS
    # Slice each shifted window exactly once; reuse across all 6 branches.
    for (dh, dw) in _ALL_TAPS:
        win = xpad_ref[0, dh:dh + H, dw:dw + W, :]
        for j, taps in enumerate(_BRANCH_TAPS):
            if (dh, dw) not in taps:        # skip structurally-zero taps
                continue
            w = convw_ref[j * 15 + dh * 5 + dw]             # SMEM scalar
            contrib = w * win
            branch_acc[j] = contrib if branch_acc[j] is None else branch_acc[j] + contrib
    acc = jnp.full((H, W, TN), aggb_ref[0], dtype=jnp.float32)   # 1x1 agg bias
    for j in range(NUM_KERNELS):
        acc = acc + aggw_ref[j] * jnp.maximum(branch_acc[j] + convb_ref[j], 0.0)
    out_ref[0] = acc


def _lane_tile(n, max_tile=256):
    """Largest lane tile that divides n and is a multiple of 128 (or n itself)."""
    if n > max_tile and n % 128 == 0:
        for t in (max_tile, 128):
            if n % t == 0:
                return t
    return n


def inception_block_pallas(xpad_all, convw, convb, aggw, aggb, h_out, w_out):
    """xpad_all: [k, Hmax+2, Wmax+4, N] f32 -> [k, Hmax, Wmax, N] f32."""
    k, hp, wp, n = xpad_all.shape
    tn = _lane_tile(n)
    grid = (k, n // tn)
    return pl.pallas_call(
        _inception_kernel,
        out_shape=jax.ShapeDtypeStruct((k, h_out, w_out, n), jnp.float32),
        grid_spec=pltpu.PrefetchScalarGridSpec(
            num_scalar_prefetch=0,
            grid=grid,
            in_specs=[
                pl.BlockSpec((1, hp, wp, tn), lambda ik, jn: (ik, 0, 0, jn)),
                pl.BlockSpec(memory_space=pltpu.MemorySpace.SMEM),   # conv w (90,)
                pl.BlockSpec(memory_space=pltpu.MemorySpace.SMEM),   # conv b (6,)
                pl.BlockSpec(memory_space=pltpu.MemorySpace.SMEM),   # agg  w (6,)
                pl.BlockSpec(memory_space=pltpu.MemorySpace.SMEM),   # agg  b (1,)
            ],
            out_specs=pl.BlockSpec((1, h_out, w_out, tn),
                                   lambda ik, jn: (ik, 0, 0, jn)),
        ),
        compiler_params=pltpu.CompilerParams(
            dimension_semantics=("parallel", "parallel")),
    )(xpad_all, convw, convb, aggw, aggb)


# ----------------------------------------------------------------------------
# Kernel 2: aggregation Linear + residual add + LayerNorm (fused, row-tiled).
# ----------------------------------------------------------------------------
def _agg_norm_kernel(agg_ref, w_ref, b_ref, x_ref, g_ref, beta_ref, out_ref):
    # bf16 operands, f32 MXU accumulation.
    y = jnp.dot(agg_ref[...], w_ref[...], preferred_element_type=jnp.float32)
    y = y + b_ref[...]                                  # Linear bias (1, D)
    z = x_ref[...] + y                                  # residual (f32)
    mean = jnp.mean(z, axis=-1, keepdims=True)
    var = jnp.mean(jnp.square(z - mean), axis=-1, keepdims=True)  # biased (PyTorch LN)
    zn = (z - mean) * jax.lax.rsqrt(var + 1e-5)         # rsqrt -> EUP slot
    out_ref[...] = zn * g_ref[...] + beta_ref[...]


def _row_tile(m, max_tile=512):
    if m <= max_tile:
        return m
    for t in range(max_tile - max_tile % 16, 15, -16):
        if m % t == 0:
            return t
    return m


def agg_norm_pallas(agg, w_t, lin_b, x_res, ln_g, ln_b):
    m, kd = agg.shape
    d = w_t.shape[1]
    tm = _row_tile(m)
    grid = (m // tm,)
    return pl.pallas_call(
        _agg_norm_kernel,
        out_shape=jax.ShapeDtypeStruct((m, d), jnp.float32),
        grid_spec=pltpu.PrefetchScalarGridSpec(
            num_scalar_prefetch=0,
            grid=grid,
            in_specs=[
                pl.BlockSpec((tm, kd), lambda i: (i, 0)),   # activations (bf16)
                pl.BlockSpec((kd, d), lambda i: (0, 0)),    # weight, VMEM-resident
                pl.BlockSpec((1, d), lambda i: (0, 0)),     # linear bias
                pl.BlockSpec((tm, d), lambda i: (i, 0)),    # residual input
                pl.BlockSpec((1, d), lambda i: (0, 0)),     # LN gamma
                pl.BlockSpec((1, d), lambda i: (0, 0)),     # LN beta
            ],
            out_specs=pl.BlockSpec((tm, d), lambda i: (i, 0)),
        ),
        compiler_params=pltpu.CompilerParams(dimension_semantics=("parallel",)),
    )(agg.astype(jnp.bfloat16), w_t.astype(jnp.bfloat16),
      lin_b.reshape(1, d), x_res, ln_g.reshape(1, d), ln_b.reshape(1, d))


# ----------------------------------------------------------------------------
# Glue: device-side FFT period discovery + 1D<->2D layout plumbing.
# ----------------------------------------------------------------------------
def fft_period_discovery(x, top_k):
    b, s, _ = x.shape
    fft = jnp.fft.fft(x[:, :, 0], axis=1)
    amps = jnp.abs(fft)[:, 1:s // 2]
    k = min(top_k, amps.shape[1])
    _, top_idx = jax.lax.top_k(amps, k)
    return s / (top_idx + 1).astype(jnp.float32)          # [B, k]


def _to_2d_lanes(x, period, hp, wp):
    """x: [B, S, D] -> halo/canvas-padded [hp, wp, B*D] view for one period."""
    b, s, d = x.shape
    h, w = s // period, period
    x2 = x[:, :h * w, :].reshape(b, h, w, d)
    x2 = jnp.transpose(x2, (1, 2, 0, 3)).reshape(h, w, b * d)
    return jnp.pad(x2, ((1, hp - h - 1), (2, wp - w - 2), (0, 0)))


def _to_1d(y2d, h, w, b, d, target_len):
    """y2d: [Hmax, Wmax, B*D] -> [B, target_len, D] (valid region only)."""
    y = y2d[:h, :w, :].reshape(h, w, b, d)
    y = jnp.transpose(y, (2, 0, 1, 3)).reshape(b, h * w, d)
    L = h * w
    if L < target_len:
        y = jnp.concatenate([y, jnp.zeros((b, target_len - L, d), y.dtype)], axis=1)
    elif L > target_len:
        y = y[:, :target_len, :]
    return y


# ----------------------------------------------------------------------------
# Parameter initialization (deterministic, synthetic).
# ----------------------------------------------------------------------------
def init_params(key, d_model, top_k=3, num_kernels=NUM_KERNELS):
    keys = jax.random.split(key, 2 * num_kernels + 4)
    convw = jnp.zeros((num_kernels, 3, 5), jnp.float32)
    convb = jnp.zeros((num_kernels,), jnp.float32)
    ki = 0
    for j, ((kh, kw), (ph, pw)) in enumerate(zip(_KERNEL_SIZES, _PADDINGS)):
        w = jax.random.normal(keys[ki], (kh, kw), jnp.float32) * 0.3; ki += 1
        bconst = jax.random.normal(keys[ki], (), jnp.float32) * 0.1; ki += 1
        oh, ow = 1 - ph, 2 - pw                   # embed small kernel in 3x5 grid
        convw = convw.at[j, oh:oh + kh, ow:ow + kw].set(w)
        convb = convb.at[j].set(bconst)
    aggw = jax.random.normal(keys[ki], (num_kernels,), jnp.float32) / num_kernels; ki += 1
    aggb = jax.random.normal(keys[ki], (1,), jnp.float32) * 0.1; ki += 1
    lin_w = jax.random.normal(keys[ki], (d_model, top_k * d_model), jnp.float32) \
        / math.sqrt(top_k * d_model); ki += 1     # nn.Linear weight [out, in]
    lin_b = jax.random.normal(keys[ki], (d_model,), jnp.float32) * 0.1; ki += 1
    return dict(
        top_k=top_k,
        convw=convw.reshape(-1),                  # (90,) flat 3x5 tap grid
        convb=convb,                              # (6,)
        aggw=aggw,                                # (6,)
        aggb=aggb,                                # (1,)
        lin_w_t=lin_w.T,                          # (top_k*D, D) for x @ W.T
        lin_b=lin_b,
        ln_g=jnp.ones((d_model,), jnp.float32),
        ln_b=jnp.zeros((d_model,), jnp.float32),
    )


# ----------------------------------------------------------------------------
# TimesBlock forward.
# ----------------------------------------------------------------------------
def timesblock_forward(params, x):
    b, s, d = x.shape
    top_k = params["top_k"]

    periods = fft_period_discovery(x, top_k)               # device, [B, k_actual]
    k_actual = periods.shape[1]

    # TODO(synk): the per-period reshape sizes are data-dependent Python ints
    # (the reference uses `.item()`); this tiny [B,k] scalar sync is unavoidable.
    hw = []
    for i in range(min(top_k, k_actual)):
        p = int(jnp.mean(periods[:, i].astype(jnp.int32).astype(jnp.float32)))
        p = max(1, min(p, s))
        h = s // p
        if h == 0:
            h, p = 1, s
        hw.append((h, p))

    h_max = max(h for h, _ in hw)
    w_max = max(w for _, w in hw)
    hp, wp = h_max + 2, w_max + 4

    # One batched, halo-padded canvas for all top_k period views -> one dispatch.
    xpad_all = jnp.stack([_to_2d_lanes(x, w, hp, wp) for _, w in hw], axis=0)

    out_all = inception_block_pallas(
        xpad_all, params["convw"], params["convb"],
        params["aggw"], params["aggb"], h_max, w_max)

    period_outputs = [_to_1d(out_all[i], h, w, b, d, s) for i, (h, w) in enumerate(hw)]
    period_outputs += [jnp.zeros_like(x)] * (top_k - len(hw))

    aggregated = jnp.concatenate(period_outputs, axis=-1)   # [B, S, top_k*D]
    out = agg_norm_pallas(
        aggregated.reshape(b * s, top_k * d),
        params["lin_w_t"], params["lin_b"],
        x.reshape(b * s, d),
        params["ln_g"], params["ln_b"])
    return out.reshape(b, s, d)


if __name__ == "__main__":
    B, S, D = 2, 16, 8
    TOP_K = 3

    key = jax.random.PRNGKey(0)
    k_param, k_x = jax.random.split(key)
    params = init_params(k_param, d_model=D, top_k=TOP_K)
    x = jax.random.normal(k_x, (B, S, D), dtype=jnp.float32)

    out = timesblock_forward(params, x)
    out = jax.block_until_ready(out)
    assert out.shape == (B, S, D) and out.dtype == jnp.float32
    assert bool(jnp.all(jnp.isfinite(out)))
    print("KERNEL_OK")
</pallas_src>

<mosaic_0001>
module attributes {stable_mosaic.version = 11 : i64} {
  func.func @_inception_kernel(%arg0: i32, %arg1: i32, %arg2: memref<1x7x16x16xf32, #tpu.memory_space<vmem>>, %arg3: memref<90xf32, #tpu.memory_space<smem>>, %arg4: memref<6xf32, #tpu.memory_space<smem>>, %arg5: memref<6xf32, #tpu.memory_space<smem>>, %arg6: memref<1xf32, #tpu.memory_space<smem>>, %arg7: memref<1x5x12x16xf32, #tpu.memory_space<vmem>>) attributes {dimension_semantics = [#tpu.dimension_semantics<parallel>, #tpu.dimension_semantics<parallel>], iteration_bounds = array<i64: 3, 1>, scalar_prefetch = 0 : i64, scratch_operands = 0 : i64, tpu.core_type = #tpu.core_type<tc>, window_params = [{transform_indices = @transform_0, window_bounds = array<i64: 1, 7, 16, 16>}, {transform_indices = @transform_1, window_bounds = array<i64: 90>}, {transform_indices = @transform_2, window_bounds = array<i64: 6>}, {transform_indices = @transform_3, window_bounds = array<i64: 6>}, {transform_indices = @transform_4, window_bounds = array<i64: 1>}, {transform_indices = @transform_5, window_bounds = array<i64: 1, 5, 12, 16>}]} {
    %c0 = arith.constant 0 : index
    %c0_0 = arith.constant 0 : index
    %c0_1 = arith.constant 0 : index
    %c0_2 = arith.constant 0 : index
    %0 = vector.load %arg2[%c0, %c0_0, %c0_1, %c0_2] : memref<1x7x16x16xf32, #tpu.memory_space<vmem>>, vector<1x5x12x16xf32>
    %1 = vector.shape_cast %0 : vector<1x5x12x16xf32> to vector<5x12x16xf32>
    %c75 = arith.constant 75 : index
    %2 = memref.load %arg3[%c75] : memref<90xf32, #tpu.memory_space<smem>>
    %3 = vector.broadcast %2 : f32 to vector<5x12x16xf32>
    %4 = arith.mulf %3, %1 : vector<5x12x16xf32>
    %c0_3 = arith.constant 0 : index
    %c0_4 = arith.constant 0 : index
    %c1 = arith.constant 1 : index
    %c0_5 = arith.constant 0 : index
    %5 = vector.load %arg2[%c0_3, %c0_4, %c1, %c0_5] : memref<1x7x16x16xf32, #tpu.memory_space<vmem>>, vector<1x5x12x16xf32>
    %6 = vector.shape_cast %5 : vector<1x5x12x16xf32> to vector<5x12x16xf32>
    %c61 = arith.constant 61 : index
    %7 = memref.load %arg3[%c61] : memref<90xf32, #tpu.memory_space<smem>>
    %8 = vector.broadcast %7 : f32 to vector<5x12x16xf32>
    %9 = arith.mulf %8, %6 : vector<5x12x16xf32>
    %c76 = arith.constant 76 : index
    %10 = memref.load %arg3[%c76] : memref<90xf32, #tpu.memory_space<smem>>
    %11 = vector.broadcast %10 : f32 to vector<5x12x16xf32>
    %12 = arith.mulf %11, %6 : vector<5x12x16xf32>
    %13 = arith.addf %4, %12 : vector<5x12x16xf32>
    %c0_6 = arith.constant 0 : index
    %c0_7 = arith.constant 0 : index
    %c2 = arith.constant 2 : index
    %c0_8 = arith.constant 0 : index
    %14 = vector.load %arg2[%c0_6, %c0_7, %c2, %c0_8] : memref<1x7x16x16xf32, #tpu.memory_space<vmem>>, vector<1x5x12x16xf32>
    %15 = vector.shape_cast %14 : vector<1x5x12x16xf32> to vector<5x12x16xf32>
    %c47 = arith.constant 47 : index
    %16 = memref.load %arg3[%c47] : memref<90xf32, #tpu.memory_space<smem>>
    %17 = vector.broadcast %16 : f32 to vector<5x12x16xf32>
    %18 = arith.mulf %17, %15 : vector<5x12x16xf32>
    %c62 = arith.constant 62 : index
    %19 = memref.load %arg3[%c62] : memref<90xf32, #tpu.memory_space<smem>>
    %20 = vector.broadcast %19 : f32 to vector<5x12x16xf32>
    %21 = arith.mulf %20, %15 : vector<5x12x16xf32>
    %22 = arith.addf %9, %21 : vector<5x12x16xf32>
    %c77 = arith.constant 77 : index
    %23 = memref.load %arg3[%c77] : memref<90xf32, #tpu.memory_space<smem>>
    %24 = vector.broadcast %23 : f32 to vector<5x12x16xf32>
    %25 = arith.mulf %24, %15 : vector<5x12x16xf32>
    %26 = arith.addf %13, %25 : vector<5x12x16xf32>
    %c0_9 = arith.constant 0 : index
    %c0_10 = arith.constant 0 : index
    %c3 = arith.constant 3 : index
    %c0_11 = arith.constant 0 : index
    %27 = vector.load %arg2[%c0_9, %c0_10, %c3, %c0_11] : memref<1x7x16x16xf32, #tpu.memory_space<vmem>>, vector<1x5x12x16xf32>
    %28 = vector.shape_cast %27 : vector<1x5x12x16xf32> to vector<5x12x16xf32>
    %c63 = arith.constant 63 : index
    %29 = memref.load %arg3[%c63] : memref<90xf32, #tpu.memory_space<smem>>
    %30 = vector.broadcast %29 : f32 to vector<5x12x16xf32>
    %31 = arith.mulf %30, %28 : vector<5x12x16xf32>
    %32 = arith.addf %22, %31 : vector<5x12x16xf32>
    %c78 = arith.constant 78 : index
    %33 = memref.load %arg3[%c78] : memref<90xf32, #tpu.memory_space<smem>>
    %34 = vector.broadcast %33 : f32 to vector<5x12x16xf32>
    %35 = arith.mulf %34, %28 : vector<5x12x16xf32>
    %36 = arith.addf %26, %35 : vector<5x12x16xf32>
    %c0_12 = arith.constant 0 : index
    %c0_13 = arith.constant 0 : index
    %c4 = arith.constant 4 : index
    %c0_14 = arith.constant 0 : index
    %37 = vector.load %arg2[%c0_12, %c0_13, %c4, %c0_14] : memref<1x7x16x16xf32, #tpu.memory_space<vmem>>, vector<1x5x12x16xf32>
    %38 = vector.shape_cast %37 : vector<1x5x12x16xf32> to vector<5x12x16xf32>
    %c79 = arith.constant 79 : index
    %39 = memref.load %arg3[%c79] : memref<90xf32, #tpu.memory_space<smem>>
    %40 = vector.broadcast %39 : f32 to vector<5x12x16xf32>
    %41 = arith.mulf %40, %38 : vector<5x12x16xf32>
    %42 = arith.addf %36, %41 : vector<5x12x16xf32>
    %c0_15 = arith.constant 0 : index
    %c1_16 = arith.constant 1 : index
    %c0_17 = arith.constant 0 : index
    %c0_18 = arith.constant 0 : index
    %43 = vector.load %arg2[%c0_15, %c1_16, %c0_17, %c0_18] : memref<1x7x16x16xf32, #tpu.memory_space<vmem>>, vector<1x5x12x16xf32>
    %44 = vector.shape_cast %43 : vector<1x5x12x16xf32> to vector<5x12x16xf32>
    %c35 = arith.constant 35 : index
    %45 = memref.load %arg3[%c35] : memref<90xf32, #tpu.memory_space<smem>>
    %46 = vector.broadcast %45 : f32 to vector<5x12x16xf32>
    %47 = arith.mulf %46, %44 : vector<5x12x16xf32>
    %c80 = arith.constant 80 : index
    %48 = memref.load %arg3[%c80] : memref<90xf32, #tpu.memory_space<smem>>
    %49 = vector.broadcast %48 : f32 to vector<5x12x16xf32>
    %50 = arith.mulf %49, %44 : vector<5x12x16xf32>
    %51 = arith.addf %42, %50 : vector<5x12x16xf32>
    %c0_19 = arith.constant 0 : index
    %c1_20 = arith.constant 1 : index
    %c1_21 = arith.constant 1 : index
    %c0_22 = arith.constant 0 : index
    %52 = vector.load %arg2[%c0_19, %c1_20, %c1_21, %c0_22] : memref<1x7x16x16xf32, #tpu.memory_space<vmem>>, vector<1x5x12x16xf32>
    %53 = vector.shape_cast %52 : vector<1x5x12x16xf32> to vector<5x12x16xf32>
    %c21 = arith.constant 21 : index
    %54 = memref.load %arg3[%c21] : memref<90xf32, #tpu.memory_space<smem>>
    %55 = vector.broadcast %54 : f32 to vector<5x12x16xf32>
    %56 = arith.mulf %55, %53 : vector<5x12x16xf32>
    %c36 = arith.constant 36 : index
    %57 = memref.load %arg3[%c36] : memref<90xf32, #tpu.memory_space<smem>>
    %58 = vector.broadcast %57 : f32 to vector<5x12x16xf32>
    %59 = arith.mulf %58, %53 : vector<5x12x16xf32>
    %60 = arith.addf %47, %59 : vector<5x12x16xf32>
    %c66 = arith.constant 66 : index
    %61 = memref.load %arg3[%c66] : memref<90xf32, #tpu.memory_space<smem>>
    %62 = vector.broadcast %61 : f32 to vector<5x12x16xf32>
    %63 = arith.mulf %62, %53 : vector<5x12x16xf32>
    %64 = arith.addf %32, %63 : vector<5x12x16xf32>
    %c81 = arith.constant 81 : index
    %65 = memref.load %arg3[%c81] : memref<90xf32, #tpu.memory_space<smem>>
    %66 = vector.broadcast %65 : f32 to vector<5x12x16xf32>
    %67 = arith.mulf %66, %53 : vector<5x12x16xf32>
    %68 = arith.addf %51, %67 : vector<5x12x16xf32>
    %c0_23 = arith.constant 0 : index
    %c1_24 = arith.constant 1 : index
    %c2_25 = arith.constant 2 : index
    %c0_26 = arith.constant 0 : index
    %69 = vector.load %arg2[%c0_23, %c1_24, %c2_25, %c0_26] : memref<1x7x16x16xf32, #tpu.memory_space<vmem>>, vector<1x5x12x16xf32>
    %70 = vector.shape_cast %69 : vector<1x5x12x16xf32> to vector<5x12x16xf32>
    %c7 = arith.constant 7 : index
    %71 = memref.load %arg3[%c7] : memref<90xf32, #tpu.memory_space<smem>>
    %72 = vector.broadcast %71 : f32 to vector<5x12x16xf32>
    %73 = arith.mulf %72, %70 : vector<5x12x16xf32>
    %c22 = arith.constant 22 : index
    %74 = memref.load %arg3[%c22] : memref<90xf32, #tpu.memory_space<smem>>
    %75 = vector.broadcast %74 : f32 to vector<5x12x16xf32>
    %76 = arith.mulf %75, %70 : vector<5x12x16xf32>
    %77 = arith.addf %56, %76 : vector<5x12x16xf32>
    %c37 = arith.constant 37 : index
    %78 = memref.load %arg3[%c37] : memref<90xf32, #tpu.memory_space<smem>>
    %79 = vector.broadcast %78 : f32 to vector<5x12x16xf32>
    %80 = arith.mulf %79, %70 : vector<5x12x16xf32>
    %81 = arith.addf %60, %80 : vector<5x12x16xf32>
    %c52 = arith.constant 52 : index
    %82 = memref.load %arg3[%c52] : memref<90xf32, #tpu.memory_space<smem>>
    %83 = vector.broadcast %82 : f32 to vector<5x12x16xf32>
    %84 = arith.mulf %83, %70 : vector<5x12x16xf32>
    %85 = arith.addf %18, %84 : vector<5x12x16xf32>
    %c67 = arith.constant 67 : index
    %86 = memref.load %arg3[%c67] : memref<90xf32, #tpu.memory_space<smem>>
    %87 = vector.broadcast %86 : f32 to vector<5x12x16xf32>
    %88 = arith.mulf %87, %70 : vector<5x12x16xf32>
    %89 = arith.addf %64, %88 : vector<5x12x16xf32>
    %c82 = arith.constant 82 : index
    %90 = memref.load %arg3[%c82] : memref<90xf32, #tpu.memory_space<smem>>
    %91 = vector.broadcast %90 : f32 to vector<5x12x16xf32>
    %92 = arith.mulf %91, %70 : vector<5x12x16xf32>
    %93 = arith.addf %68, %92 : vector<5x12x16xf32>
    %c0_27 = arith.constant 0 : index
    %c1_28 = arith.constant 1 : index
    %c3_29 = arith.constant 3 : index
    %c0_30 = arith.constant 0 : index
    %94 = vector.load %arg2[%c0_27, %c1_28, %c3_29, %c0_30] : memref<1x7x16x16xf32, #tpu.memory_space<vmem>>, vector<1x5x12x16xf32>
    %95 = vector.shape_cast %94 : vector<1x5x12x16xf32> to vector<5x12x16xf32>
    %c23 = arith.constant 23 : index
    %96 = memref.load %arg3[%c23] : memref<90xf32, #tpu.memory_space<smem>>
    %97 = vector.broadcast %96 : f32 to vector<5x12x16xf32>
    %98 = arith.mulf %97, %95 : vector<5x12x16xf32>
    %99 = arith.addf %77, %98 : vector<5x12x16xf32>
    %c38 = arith.constant 38 : index
    %100 = memref.load %arg3[%c38] : memref<90xf32, #tpu.memory_space<smem>>
    %101 = vector.broadcast %100 : f32 to vector<5x12x16xf32>
    %102 = arith.mulf %101, %95 : vector<5x12x16xf32>
    %103 = arith.addf %81, %102 : vector<5x12x16xf32>
    %c68 = arith.constant 68 : index
    %104 = memref.load %arg3[%c68] : memref<90xf32, #tpu.memory_space<smem>>
    %105 = vector.broadcast %104 : f32 to vector<5x12x16xf32>
    %106 = arith.mulf %105, %95 : vector<5x12x16xf32>
    %107 = arith.addf %89, %106 : vector<5x12x16xf32>
    %c83 = arith.constant 83 : index
    %108 = memref.load %arg3[%c83] : memref<90xf32, #tpu.memory_space<smem>>
    %109 = vector.broadcast %108 : f32 to vector<5x12x16xf32>
    %110 = arith.mulf %109, %95 : vector<5x12x16xf32>
    %111 = arith.addf %93, %110 : vector<5x12x16xf32>
    %c0_31 = arith.constant 0 : index
    %c1_32 = arith.constant 1 : index
    %c4_33 = arith.constant 4 : index
    %c0_34 = arith.constant 0 : index
    %112 = vector.load %arg2[%c0_31, %c1_32, %c4_33, %c0_34] : memref<1x7x16x16xf32, #tpu.memory_space<vmem>>, vector<1x5x12x16xf32>
    %113 = vector.shape_cast %112 : vector<1x5x12x16xf32> to vector<5x12x16xf32>
    %c39 = arith.constant 39 : index
    %114 = memref.load %arg3[%c39] : memref<90xf32, #tpu.memory_space<smem>>
    %115 = vector.broadcast %114 : f32 to vector<5x12x16xf32>
    %116 = arith.mulf %115, %113 : vector<5x12x16xf32>
    %117 = arith.addf %103, %116 : vector<5x12x16xf32>
    %c84 = arith.constant 84 : index
    %118 = memref.load %arg3[%c84] : memref<90xf32, #tpu.memory_space<smem>>
    %119 = vector.broadcast %118 : f32 to vector<5x12x16xf32>
    %120 = arith.mulf %119, %113 : vector<5x12x16xf32>
    %121 = arith.addf %111, %120 : vector<5x12x16xf32>
    %c0_35 = arith.constant 0 : index
    %c2_36 = arith.constant 2 : index
    %c0_37 = arith.constant 0 : index
    %c0_38 = arith.constant 0 : index
    %122 = vector.load %arg2[%c0_35, %c2_36, %c0_37, %c0_38] : memref<1x7x16x16xf32, #tpu.memory_space<vmem>>, vector<1x5x12x16xf32>
    %123 = vector.shape_cast %122 : vector<1x5x12x16xf32> to vector<5x12x16xf32>
    %c85 = arith.constant 85 : index
    %124 = memref.load %arg3[%c85] : memref<90xf32, #tpu.memory_space<smem>>
    %125 = vector.broadcast %124 : f32 to vector<5x12x16xf32>
    %126 = arith.mulf %125, %123 : vector<5x12x16xf32>
    %127 = arith.addf %121, %126 : vector<5x12x16xf32>
    %c0_39 = arith.constant 0 : index
    %c2_40 = arith.constant 2 : index
    %c1_41 = arith.constant 1 : index
    %c0_42 = arith.constant 0 : index
    %128 = vector.load %arg2[%c0_39, %c2_40, %c1_41, %c0_42] : memref<1x7x16x16xf32, #tpu.memory_space<vmem>>, vector<1x5x12x16xf32>
    %129 = vector.shape_cast %128 : vector<1x5x12x16xf32> to vector<5x12x16xf32>
    %c71 = arith.constant 71 : index
    %130 = memref.load %arg3[%c71] : memref<90xf32, #tpu.memory_space<smem>>
    %131 = vector.broadcast %130 : f32 to vector<5x12x16xf32>
    %132 = arith.mulf %131, %129 : vector<5x12x16xf32>
    %133 = arith.addf %107, %132 : vector<5x12x16xf32>
    %c86 = arith.constant 86 : index
    %134 = memref.load %arg3[%c86] : memref<90xf32, #tpu.memory_space<smem>>
    %135 = vector.broadcast %134 : f32 to vector<5x12x16xf32>
    %136 = arith.mulf %135, %129 : vector<5x12x16xf32>
    %137 = arith.addf %127, %136 : vector<5x12x16xf32>
    %c0_43 = arith.constant 0 : index
    %c2_44 = arith.constant 2 : index
    %c2_45 = arith.constant 2 : index
    %c0_46 = arith.constant 0 : index
    %138 = vector.load %arg2[%c0_43, %c2_44, %c2_45, %c0_46] : memref<1x7x16x16xf32, #tpu.memory_space<vmem>>, vector<1x5x12x16xf32>
    %139 = vector.shape_cast %138 : vector<1x5x12x16xf32> to vector<5x12x16xf32>
    %c57 = arith.constant 57 : index
    %140 = memref.load %arg3[%c57] : memref<90xf32, #tpu.memory_space<smem>>
    %141 = vector.broadcast %140 : f32 to vector<5x12x16xf32>
    %142 = arith.mulf %141, %139 : vector<5x12x16xf32>
    %143 = arith.addf %85, %142 : vector<5x12x16xf32>
    %c72 = arith.constant 72 : index
    %144 = memref.load %arg3[%c72] : memref<90xf32, #tpu.memory_space<smem>>
    %145 = vector.broadcast %144 : f32 to vector<5x12x16xf32>
    %146 = arith.mulf %145, %139 : vector<5x12x16xf32>
    %147 = arith.addf %133, %146 : vector<5x12x16xf32>
    %c87 = arith.constant 87 : index
    %148 = memref.load %arg3[%c87] : memref<90xf32, #tpu.memory_space<smem>>
    %149 = vector.broadcast %148 : f32 to vector<5x12x16xf32>
    %150 = arith.mulf %149, %139 : vector<5x12x16xf32>
    %151 = arith.addf %137, %150 : vector<5x12x16xf32>
    %c0_47 = arith.constant 0 : index
    %c2_48 = arith.constant 2 : index
    %c3_49 = arith.constant 3 : index
    %c0_50 = arith.constant 0 : index
    %152 = vector.load %arg2[%c0_47, %c2_48, %c3_49, %c0_50] : memref<1x7x16x16xf32, #tpu.memory_space<vmem>>, vector<1x5x12x16xf32>
    %153 = vector.shape_cast %152 : vector<1x5x12x16xf32> to vector<5x12x16xf32>
    %c73 = arith.constant 73 : index
    %154 = memref.load %arg3[%c73] : memref<90xf32, #tpu.memory_space<smem>>
    %155 = vector.broadcast %154 : f32 to vector<5x12x16xf32>
    %156 = arith.mulf %155, %153 : vector<5x12x16xf32>
    %157 = arith.addf %147, %156 : vector<5x12x16xf32>
    %c88 = arith.constant 88 : index
    %158 = memref.load %arg3[%c88] : memref<90xf32, #tpu.memory_space<smem>>
    %159 = vector.broadcast %158 : f32 to vector<5x12x16xf32>
    %160 = arith.mulf %159, %153 : vector<5x12x16xf32>
    %161 = arith.addf %151, %160 : vector<5x12x16xf32>
    %c0_51 = arith.constant 0 : index
    %c2_52 = arith.constant 2 : index
    %c4_53 = arith.constant 4 : index
    %c0_54 = arith.constant 0 : index
    %162 = vector.load %arg2[%c0_51, %c2_52, %c4_53, %c0_54] : memref<1x7x16x16xf32, #tpu.memory_space<vmem>>, vector<1x5x12x16xf32>
    %163 = vector.shape_cast %162 : vector<1x5x12x16xf32> to vector<5x12x16xf32>
    %c89 = arith.constant 89 : index
    %164 = memref.load %arg3[%c89] : memref<90xf32, #tpu.memory_space<smem>>
    %165 = vector.broadcast %164 : f32 to vector<5x12x16xf32>
    %166 = arith.mulf %165, %163 : vector<5x12x16xf32>
    %167 = arith.addf %161, %166 : vector<5x12x16xf32>
    %c0_55 = arith.constant 0 : index
    %168 = memref.load %arg6[%c0_55] : memref<1xf32, #tpu.memory_space<smem>>
    %169 = vector.broadcast %168 : f32 to vector<5x12x16xf32>
    %c0_56 = arith.constant 0 : index
    %170 = memref.load %arg5[%c0_56] : memref<6xf32, #tpu.memory_space<smem>>
    %c0_57 = arith.constant 0 : index
    %171 = memref.load %arg4[%c0_57] : memref<6xf32, #tpu.memory_space<smem>>
    %172 = vector.broadcast %171 : f32 to vector<5x12x16xf32>
    %173 = arith.addf %73, %172 : vector<5x12x16xf32>
    %cst = arith.constant 0.000000e+00 : f32
    %174 = vector.broadcast %cst : f32 to vector<5x12x16xf32>
    %175 = arith.maximumf %173, %174 : vector<5x12x16xf32>
    %176 = vector.broadcast %170 : f32 to vector<5x12x16xf32>
    %177 = arith.mulf %176, %175 : vector<5x12x16xf32>
    %178 = arith.addf %169, %177 : vector<5x12x16xf32>
    %c1_58 = arith.constant 1 : index
    %179 = memref.load %arg5[%c1_58] : memref<6xf32, #tpu.memory_space<smem>>
    %c1_59 = arith.constant 1 : index
    %180 = memref.load %arg4[%c1_59] : memref<6xf32, #tpu.memory_space<smem>>
    %181 = vector.broadcast %180 : f32 to vector<5x12x16xf32>
    %182 = arith.addf %99, %181 : vector<5x12x16xf32>
    %cst_60 = arith.constant 0.000000e+00 : f32
    %183 = vector.broadcast %cst_60 : f32 to vector<5x12x16xf32>
    %184 = arith.maximumf %182, %183 : vector<5x12x16xf32>
    %185 = vector.broadcast %179 : f32 to vector<5x12x16xf32>
    %186 = arith.mulf %185, %184 : vector<5x12x16xf32>
    %187 = arith.addf %178, %186 : vector<5x12x16xf32>
    %c2_61 = arith.constant 2 : index
    %188 = memref.load %arg5[%c2_61] : memref<6xf32, #tpu.memory_space<smem>>
    %c2_62 = arith.constant 2 : index
    %189 = memref.load %arg4[%c2_62] : memref<6xf32, #tpu.memory_space<smem>>
    %190 = vector.broadcast %189 : f32 to vector<5x12x16xf32>
    %191 = arith.addf %117, %190 : vector<5x12x16xf32>
    %cst_63 = arith.constant 0.000000e+00 : f32
    %192 = vector.broadcast %cst_63 : f32 to vector<5x12x16xf32>
    %193 = arith.maximumf %191, %192 : vector<5x12x16xf32>
    %194 = vector.broadcast %188 : f32 to vector<5x12x16xf32>
    %195 = arith.mulf %194, %193 : vector<5x12x16xf32>
    %196 = arith.addf %187, %195 : vector<5x12x16xf32>
    %c3_64 = arith.constant 3 : index
    %197 = memref.load %arg5[%c3_64] : memref<6xf32, #tpu.memory_space<smem>>
    %c3_65 = arith.constant 3 : index
    %198 = memref.load %arg4[%c3_65] : memref<6xf32, #tpu.memory_space<smem>>
    %199 = vector.broadcast %198 : f32 to vector<5x12x16xf32>
    %200 = arith.addf %143, %199 : vector<5x12x16xf32>
    %cst_66 = arith.constant 0.000000e+00 : f32
    %201 = vector.broadcast %cst_66 : f32 to vector<5x12x16xf32>
    %202 = arith.maximumf %200, %201 : vector<5x12x16xf32>
    %203 = vector.broadcast %197 : f32 to vector<5x12x16xf32>
    %204 = arith.mulf %203, %202 : vector<5x12x16xf32>
    %205 = arith.addf %196, %204 : vector<5x12x16xf32>
    %c4_67 = arith.constant 4 : index
    %206 = memref.load %arg5[%c4_67] : memref<6xf32, #tpu.memory_space<smem>>
    %c4_68 = arith.constant 4 : index
    %207 = memref.load %arg4[%c4_68] : memref<6xf32, #tpu.memory_space<smem>>
    %208 = vector.broadcast %207 : f32 to vector<5x12x16xf32>
    %209 = arith.addf %157, %208 : vector<5x12x16xf32>
    %cst_69 = arith.constant 0.000000e+00 : f32
    %210 = vector.broadcast %cst_69 : f32 to vector<5x12x16xf32>
    %211 = arith.maximumf %209, %210 : vector<5x12x16xf32>
    %212 = vector.broadcast %206 : f32 to vector<5x12x16xf32>
    %213 = arith.mulf %212, %211 : vector<5x12x16xf32>
    %214 = arith.addf %205, %213 : vector<5x12x16xf32>
    %c5 = arith.constant 5 : index
    %215 = memref.load %arg5[%c5] : memref<6xf32, #tpu.memory_space<smem>>
    %c5_70 = arith.constant 5 : index
    %216 = memref.load %arg4[%c5_70] : memref<6xf32, #tpu.memory_space<smem>>
    %217 = vector.broadcast %216 : f32 to vector<5x12x16xf32>
    %218 = arith.addf %167, %217 : vector<5x12x16xf32>
    %cst_71 = arith.constant 0.000000e+00 : f32
    %219 = vector.broadcast %cst_71 : f32 to vector<5x12x16xf32>
    %220 = arith.maximumf %218, %219 : vector<5x12x16xf32>
    %221 = vector.broadcast %215 : f32 to vector<5x12x16xf32>
    %222 = arith.mulf %221, %220 : vector<5x12x16xf32>
    %223 = arith.addf %214, %222 : vector<5x12x16xf32>
    %c0_72 = arith.constant 0 : index
    %c0_73 = arith.constant 0 : index
    %c0_74 = arith.constant 0 : index
    %c0_75 = arith.constant 0 : index
    %224 = vector.load %arg7[%c0_72, %c0_73, %c0_74, %c0_75] : memref<1x5x12x16xf32, #tpu.memory_space<vmem>>, vector<1x5x12x16xf32>
    %225 = vector.shape_cast %224 : vector<1x5x12x16xf32> to vector<5x12x16xf32>
    %226 = vector.shape_cast %223 : vector<5x12x16xf32> to vector<1x5x12x16xf32>
    tpu.vector_store %arg7[%c0_72, %c0_73, %c0_74, %c0_75], %226 {strides = array<i32>} : memref<1x5x12x16xf32, #tpu.memory_space<vmem>>, vector<1x5x12x16xf32>,
    return
  }
  func.func @transform_0(%arg0: i32, %arg1: i32) -> (i32, i32, i32, i32) {
    %c0_i32 = arith.constant 0 : i32
    %c0_i32_0 = arith.constant 0 : i32
    %c0_i32_1 = arith.constant 0 : i32
    return %arg0, %c0_i32, %c0_i32_0, %arg1 : i32, i32, i32, i32
  }
  func.func @transform_1(%arg0: i32, %arg1: i32) -> i32 {
    %c0_i32 = arith.constant 0 : i32
    %c0_i32_0 = arith.constant 0 : i32
    return %c0_i32 : i32
  }
  func.func @transform_2(%arg0: i32, %arg1: i32) -> i32 {
    %c0_i32 = arith.constant 0 : i32
    %c0_i32_0 = arith.constant 0 : i32
    return %c0_i32 : i32
  }
  func.func @transform_3(%arg0: i32, %arg1: i32) -> i32 {
    %c0_i32 = arith.constant 0 : i32
    %c0_i32_0 = arith.constant 0 : i32
    return %c0_i32 : i32
  }
  func.func @transform_4(%arg0: i32, %arg1: i32) -> i32 {
    %c0_i32 = arith.constant 0 : i32
    %c0_i32_0 = arith.constant 0 : i32
    return %c0_i32 : i32
  }
  func.func @transform_5(%arg0: i32, %arg1: i32) -> (i32, i32, i32, i32) {
    %c0_i32 = arith.constant 0 : i32
    %c0_i32_0 = arith.constant 0 : i32
    %c0_i32_1 = arith.constant 0 : i32
    return %arg0, %c0_i32, %c0_i32_0, %arg1 : i32, i32, i32, i32
  }
}

</mosaic_0001>

<llo_original>
// kernel: tpu_custom_call.1
$region0: #{tpu_custom_call.1}
  #allocation0 [shape = 'u32[]', space=smem, size = 0x4, offset = 0x4, fixed_abs, tag = 'smem constant byte address 0x4 - core index']
  #allocation1 [shape = 'u32[144,128]{1,0:T(1,128)}', space=vmem, size = 0x12000, scoped, tag = 'internal scratch']
  #allocation2 [shape = 'f32[1]{0:T(128)S(6)}', space=smem, size = 0x200, scoped, tag = 'scoped memory for tpu_custom_call.1']
  %s0 = inlined_call_operand.hbm [shape: f32[3,7,16,16], index: 0, kind: input, shape index: {}]
  %s1 = inlined_call_operand.vmem [shape: f32[90], index: 1, kind: input, shape index: {}]
  %s2 = inlined_call_operand.vmem [shape: f32[6], index: 2, kind: input, shape index: {}]
  %s3 = inlined_call_operand.vmem [shape: f32[6], index: 3, kind: input, shape index: {}]
  %s4 = inlined_call_operand.<no memory space> [shape: f32[1], index: 4, kind: input, shape index: {}]
  %s5 = inlined_call_operand.hbm [shape: f32[3,5,12,16], index: 5, kind: output, shape index: {}]
  %s6 = sld [smem:[#allocation0]]
  $region69: #{tpu_custom_call.1} parent=0
    _
  %s8 = ssub.s32 1, %s6
  %s9 = scalar_select 0, %s8, %s6
  %10 = sst [smem:[#allocation2]] %s4
  $region1: #{tpu_custom_call.1} parent=0
    #allocation3 [shape = 'u8[114688]{0}', space=vmem, size = 0x1c000, scoped, tag = 'input window, operand 0']
    #allocation4 [shape = 's32[2]{0}', space=sflag, size = 0x8, scoped, tag = 'scoped memory for tpu_custom_call.1']
    #allocation5 [shape = 's32[2]{0}', space=sflag, size = 0x8, scoped, tag = 'scoped memory for tpu_custom_call.1']
    #allocation6 [shape = 's32[2]{0}', space=sflag, size = 0x8, scoped, tag = 'scoped memory for tpu_custom_call.1']
    #allocation7 [shape = 'u8[512]{0}', space=smem, size = 0x200, scoped, tag = 'input window, operand 1, single buffered']
    #allocation8 [shape = 'u8[512]{0}', space=smem, size = 0x200, scoped, tag = 'input window, operand 2, single buffered']
    #allocation9 [shape = 's32[1]{0}', space=sflag, size = 0x4, scoped, tag = 'scoped memory for tpu_custom_call.1']
    #allocation10 [shape = 'u8[512]{0}', space=smem, size = 0x200, scoped, tag = 'input window, operand 3, single buffered']
    #allocation11 [shape = 'u8[81920]{0}', space=vmem, size = 0x14000, scoped, tag = 'output window, operand 0']
    %11 = vsyncpa [#allocation4], 0
    %s12 = scalar_lea.sflag [#allocation4], 1
    %13 = vsyncpa %s12, 0
    %14 = vsyncpa [#allocation6], 0
    %15 = vsyncpa [#allocation9], 0
    %16 = vsyncpa [#allocation5], 0
    %s17 = scalar_lea.sflag [#allocation5], 1
    %18 = vsyncpa %s17, 0
    loop: start=0, step=1, limit=5
    $region2: #{tpu_custom_call.1} parent=1 // loop_pre_header
      _
    $region3: #{tpu_custom_call.1} parent=1 // loop_header
      %s20 = sphi 0, %s24
      %p21 = scmp.ge.s32.totalorder %s20, 5
      %s27 = sphi 0, %s39
      %s28 = sphi 0, %s35
      %s29 = sphi 0, %s27
      %s30 = sphi 0, %s28
      %s31 = sphi 0, %s29
      %s32 = sphi 0, %s30
      %s44 = sphi 0, %s46
      %s47 = sphi 0, %s44
      %s48 = sphi 0, %s47
      %s64 = sphi 0, %s48
      %s68 = sphi 0, %s68
      %s70 = sphi 0, %s68
      %s71 = sphi 0, %s70
      %s85 = sphi 0, %s71
      %s89 = sphi 0, %s89
      %s91 = sphi 0, %s89
      %s92 = sphi 0, %s91
      %s106 = sphi 0, %s92
      %s110 = sphi 0, %s110
      %s112 = sphi 0, %s110
      %s113 = sphi 0, %s112
      %s127 = sphi 0, %s113
      %s131 = sphi 0, %s131
      %s133 = sphi 0, %s131
      %s134 = sphi 0, %s133
      %s148 = sphi 0, %s134
      %s156 = sphi 0, %s158
      %s159 = sphi 0, %s156
      %s160 = sphi 0, %s159
      %s176 = sphi 0, %s160
    $region4: #{tpu_custom_call.1} parent=1 // loop_header_branch
      %23 = sbr.rel (%p21) target = $region8
    $region5: #{tpu_custom_call.1} parent=1 // loop_body
      %s25 = ssub.s32 %s20, 1
      %s26 = ssub.s32 %s20, 2
      %s33 = sadd.s32 1, %s28
      %p34 = scmp.ge.s32.totalorder %s33, 1
      %s35 = scalar_select %p34, 0, %s33
      %s36 = sadd.s32 1, %s27
      %s37 = scalar_select %p34, %s36, %s27
      %p38 = scmp.ge.s32.totalorder %s37, 3
      %s39 = scalar_select %p38, 0, %s37
      %s40 = ssub.s32 %s27, %s39
      %s41 = ssub.s32 %s28, %s35
      %s42 = sor.u32 %s40, %s41
      %p43 = scmp.eq.s32.totalorder %s42, 0
      %s45 = sadd.s32 %s44, 1
      %s46 = scalar_select %p43, %s44, %s45
      %p49 = pneg %p43
      %p50 = scmp.eq.s32.totalorder %s20, 2
      %p51 = por %p49, %p50
      %p52 = scmp.ne.s32.totalorder %s44, %s47
      %p53 = scmp.eq.s32.totalorder %s20, 0
      %p54 = por %p52, %p53
      %p55 = scmp.ne.s32.totalorder %s44, %s47
      %p56 = scmp.eq.s32.totalorder %s25, 2
      %p57 = por %p55, %p56
      %p58 = scmp.ne.s32.totalorder %s47, %s48
      %p59 = scmp.eq.s32.totalorder %s25, 0
      %p60 = por %p58, %p59
      %p61 = scmp.ne.s32.totalorder %s47, %s48
      %p62 = scmp.eq.s32.totalorder %s26, 2
      %p63 = por %p61, %p62
      %p65 = scmp.ne.s32.totalorder %s48, %s64
      %p66 = scmp.eq.s32.totalorder %s26, 0
      %p67 = por %p65, %p66
      %s69 = sadd.s32 %s68, 1
      %p72 = scmp.eq.s32.totalorder %s20, 2
      %p73 = scmp.ne.s32.totalorder %s68, %s70
      %p74 = scmp.eq.s32.totalorder %s20, 0
      %p75 = por %p73, %p74
      %p76 = scmp.ne.s32.totalorder %s68, %s70
      %p77 = scmp.eq.s32.totalorder %s25, 2
      %p78 = por %p76, %p77
      %p79 = scmp.ne.s32.totalorder %s70, %s71
      %p80 = scmp.eq.s32.totalorder %s25, 0
      %p81 = por %p79, %p80
      %p82 = scmp.ne.s32.totalorder %s70, %s71
      %p83 = scmp.eq.s32.totalorder %s26, 2
      %p84 = por %p82, %p83
      %p86 = scmp.ne.s32.totalorder %s71, %s85
      %p87 = scmp.eq.s32.totalorder %s26, 0
      %p88 = por %p86, %p87
      %s90 = sadd.s32 %s89, 1
      %p93 = scmp.eq.s32.totalorder %s20, 2
      %p94 = scmp.ne.s32.totalorder %s89, %s91
      %p95 = scmp.eq.s32.totalorder %s20, 0
      %p96 = por %p94, %p95
      %p97 = scmp.ne.s32.totalorder %s89, %s91
      %p98 = scmp.eq.s32.totalorder %s25, 2
      %p99 = por %p97, %p98
      %p100 = scmp.ne.s32.totalorder %s91, %s92
      %p101 = scmp.eq.s32.totalorder %s25, 0
      %p102 = por %p100, %p101
      %p103 = scmp.ne.s32.totalorder %s91, %s92
      %p104 = scmp.eq.s32.totalorder %s26, 2
      %p105 = por %p103, %p104
      %p107 = scmp.ne.s32.totalorder %s92, %s106
      %p108 = scmp.eq.s32.totalorder %s26, 0
      %p109 = por %p107, %p108
      %s111 = sadd.s32 %s110, 1
      %p114 = scmp.eq.s32.totalorder %s20, 2
      %p115 = scmp.ne.s32.totalorder %s110, %s112
      %p116 = scmp.eq.s32.totalorder %s20, 0
      %p117 = por %p115, %p116
      %p118 = scmp.ne.s32.totalorder %s110, %s112
      %p119 = scmp.eq.s32.totalorder %s25, 2
      %p120 = por %p118, %p119
      %p121 = scmp.ne.s32.totalorder %s112, %s113
      %p122 = scmp.eq.s32.totalorder %s25, 0
      %p123 = por %p121, %p122
      %p124 = scmp.ne.s32.totalorder %s112, %s113
      %p125 = scmp.eq.s32.totalorder %s26, 2
      %p126 = por %p124, %p125
      %p128 = scmp.ne.s32.totalorder %s113, %s127
      %p129 = scmp.eq.s32.totalorder %s26, 0
      %p130 = por %p128, %p129
      %s132 = sadd.s32 %s131, 1
      %p135 = scmp.eq.s32.totalorder %s20, 2
      %p136 = scmp.ne.s32.totalorder %s131, %s133
      %p137 = scmp.eq.s32.totalorder %s20, 0
      %p138 = por %p136, %p137
      %p139 = scmp.ne.s32.totalorder %s131, %s133
      %p140 = scmp.eq.s32.totalorder %s25, 2
      %p141 = por %p139, %p140
      %p142 = scmp.ne.s32.totalorder %s133, %s134
      %p143 = scmp.eq.s32.totalorder %s25, 0
      %p144 = por %p142, %p143
      %p145 = scmp.ne.s32.totalorder %s133, %s134
      %p146 = scmp.eq.s32.totalorder %s26, 2
      %p147 = por %p145, %p146
      %p149 = scmp.ne.s32.totalorder %s134, %s148
      %p150 = scmp.eq.s32.totalorder %s26, 0
      %p151 = por %p149, %p150
      %s152 = ssub.s32 %s27, %s39
      %s153 = ssub.s32 %s28, %s35
      %s154 = sor.u32 %s152, %s153
      %p155 = scmp.eq.s32.totalorder %s154, 0
      %s157 = sadd.s32 %s156, 1
      %s158 = scalar_select %p155, %s156, %s157
      %p161 = pneg %p155
      %p162 = scmp.eq.s32.totalorder %s20, 2
      %p163 = por %p161, %p162
      %p164 = scmp.ne.s32.totalorder %s156, %s159
      %p165 = scmp.eq.s32.totalorder %s20, 0
      %p166 = por %p164, %p165
      %p167 = scmp.ne.s32.totalorder %s156, %s159
      %p168 = scmp.eq.s32.totalorder %s25, 2
      %p169 = por %p167, %p168
      %p170 = scmp.ne.s32.totalorder %s159, %s160
      %p171 = scmp.eq.s32.totalorder %s25, 0
      %p172 = por %p170, %p171
      %p173 = scmp.ne.s32.totalorder %s159, %s160
      %p174 = scmp.eq.s32.totalorder %s26, 2
      %p175 = por %p173, %p174
      %p177 = scmp.ne.s32.totalorder %s160, %s176
      %p178 = scmp.eq.s32.totalorder %s26, 0
      %p179 = por %p177, %p178
      %p180 = scmp.le.s32.totalorder 1, %s20
      %p181 = scmp.lt.s32.totalorder %s20, 4
      %p182 = pnand %p180, %p181
      %p183 = pneg %p182
      // Predicated region
      $region9: #{tpu_custom_call.1} parent=5 // pred_check
        _
      $region10: #{tpu_custom_call.1} parent=5 // pred_check_branch
        %185 = sbr.rel (%p182) target = $region12
      $region11: #{tpu_custom_call.1} parent=5 // pred_region
        %s186 = ssub.s32 %s20, 1
        // Predicated region
        $region13: #{tpu_custom_call.1} parent=11 // pred_check
          %p187 = pneg %p81
        $region14: #{tpu_custom_call.1} parent=11 // pred_check_branch
          %189 = sbr.rel (%p187) target = $region16
        $region15: #{tpu_custom_call.1} parent=11 // pred_region
          %s191 = ssub.s32 16, 16
          %192 = vsyncadd [#allocation6], %s191
          %s194 = sshll.u32 %s1, 4
          %s195 = int_to_ptr.vmem [resolvable:$true] %s194
          %197 = dma.vmem_to_smem %s195, 16, [#allocation7], [#allocation6]
        $region16: #{tpu_custom_call.1} parent=11 // pred_fallthru
          _
        // Predicated region
        $region17: #{tpu_custom_call.1} parent=11 // pred_check
          %p198 = pneg %p102
        $region18: #{tpu_custom_call.1} parent=11 // pred_check_branch
          %200 = sbr.rel (%p198) target = $region20
        $region19: #{tpu_custom_call.1} parent=11 // pred_region
          %s202 = ssub.s32 16, 16
          %203 = vsyncadd [#allocation9], %s202
          %s205 = sshll.u32 %s2, 4
          %s206 = int_to_ptr.vmem [resolvable:$true] %s205
          %208 = dma.vmem_to_smem %s206, 16, [#allocation8], [#allocation9]
        $region20: #{tpu_custom_call.1} parent=11 // pred_fallthru
          _
        // Predicated region
        $region21: #{tpu_custom_call.1} parent=11 // pred_check
          %p209 = pneg %p123
        $region22: #{tpu_custom_call.1} parent=11 // pred_check_branch
          %211 = sbr.rel (%p209) target = $region24
        $region23: #{tpu_custom_call.1} parent=11 // pred_region
          %s213 = ssub.s32 16, 16
          %214 = vsyncadd [#allocation9], %s213
          %s216 = sshll.u32 %s3, 4
          %s217 = int_to_ptr.vmem [resolvable:$true] %s216
          %219 = dma.vmem_to_smem %s217, 16, [#allocation10], [#allocation9]
        $region24: #{tpu_custom_call.1} parent=11 // pred_fallthru
          _
        // Predicated region
        $region25: #{tpu_custom_call.1} parent=11 // pred_check
          %p220 = pneg %p144
        $region26: #{tpu_custom_call.1} parent=11 // pred_check_branch
          %222 = sbr.rel (%p220) target = $region28
        $region27: #{tpu_custom_call.1} parent=11 // pred_region
          _
        $region28: #{tpu_custom_call.1} parent=11 // pred_fallthru
          _
      $region12: #{tpu_custom_call.1} parent=5 // pred_fallthru
        _
      %p223 = scmp.lt.s32.totalorder %s20, 3
      // Predicated region
      $region29: #{tpu_custom_call.1} parent=5 // pred_check
        %p224 = pneg %p223
      $region30: #{tpu_custom_call.1} parent=5 // pred_check_branch
        %226 = sbr.rel (%p224) target = $region32
      $region31: #{tpu_custom_call.1} parent=5 // pred_region
        // Predicated region
        $region33: #{tpu_custom_call.1} parent=31 // pred_check
          %p227 = pneg %p54
        $region34: #{tpu_custom_call.1} parent=31 // pred_check_branch
          %229 = sbr.rel (%p227) target = $region36
        $region35: #{tpu_custom_call.1} parent=31 // pred_region
          %s230 = sand.u32 %s44, 1
          %s231 = scalar_lea.sflag [#allocation4], %s230
          %s232 = sand.u32 %s44, 1
          %s233 = smul.addr %s232, 112
          %s234 = scalar_lea.vmem [#allocation3], %s233
          %s236 = ssub.s32 1792, 1792
          %237 = vsyncadd %s231, %s236
          %s238 = smul.addr %s27, 14
          %s239 = sadd.s32 %s28, %s238
          %s240 = smul.addr %s239, 128
          %s241 = scalar_lea.hbm %s0, %s240
          %s242 = sshll.u32 %s234, 4
          %s243 = int_to_ptr.vmem [resolvable:$true] %s242
          %248 = dma.hbm_to_vmem [thread:$0]  %s241, 1792, %s243, %s231, 128, 128, 8
        $region36: #{tpu_custom_call.1} parent=31 // pred_fallthru
          _
      $region32: #{tpu_custom_call.1} parent=5 // pred_fallthru
        _
      %p249 = scmp.le.s32.totalorder 1, %s20
      %p250 = scmp.lt.s32.totalorder %s20, 4
      %p251 = pnand %p249, %p250
      %p252 = pneg %p251
      // Predicated region
      $region37: #{tpu_custom_call.1} parent=5 // pred_check
        _
      $region38: #{tpu_custom_call.1} parent=5 // pred_check_branch
        %254 = sbr.rel (%p251) target = $region40
      $region39: #{tpu_custom_call.1} parent=5 // pred_region
        %s255 = ssub.s32 %s20, 1
        %s256 = sand.u32 %s47, 1
        %s257 = scalar_lea.sflag [#allocation4], %s256
        %s258 = sand.u32 %s47, 1
        %s259 = smul.addr %s258, 112
        %s260 = scalar_lea.vmem [#allocation3], %s259
        // Predicated region
        $region41: #{tpu_custom_call.1} parent=39 // pred_check
          %p261 = pneg %p60
        $region42: #{tpu_custom_call.1} parent=39 // pred_check_branch
          %263 = sbr.rel (%p261) target = $region44
        $region43: #{tpu_custom_call.1} parent=39 // pred_region
          %264 = dma.done %s257, 1792
        $region44: #{tpu_custom_call.1} parent=39 // pred_fallthru
          _
        // Predicated region
        $region45: #{tpu_custom_call.1} parent=39 // pred_check
          %p265 = pneg %p81
        $region46: #{tpu_custom_call.1} parent=39 // pred_check_branch
          %267 = sbr.rel (%p265) target = $region48
        $region47: #{tpu_custom_call.1} parent=39 // pred_region
          %268 = dma.done [#allocation6], 16
        $region48: #{tpu_custom_call.1} parent=39 // pred_fallthru
          _
        // Predicated region
        $region49: #{tpu_custom_call.1} parent=39 // pred_check
          %p269 = pneg %p102
        $region50: #{tpu_custom_call.1} parent=39 // pred_check_branch
          %271 = sbr.rel (%p269) target = $region52
        $region51: #{tpu_custom_call.1} parent=39 // pred_region
          %272 = dma.done [#allocation9], 16
        $region52: #{tpu_custom_call.1} parent=39 // pred_fallthru
          _
        // Predicated region
        $region53: #{tpu_custom_call.1} parent=39 // pred_check
          %p273 = pneg %p123
        $region54: #{tpu_custom_call.1} parent=39 // pred_check_branch
          %275 = sbr.rel (%p273) target = $region56
        $region55: #{tpu_custom_call.1} parent=39 // pred_region
          %276 = dma.done [#allocation9], 16
        $region56: #{tpu_custom_call.1} parent=39 // pred_fallthru
          _
        %277 = sfence
        %s278 = sand.u32 %s47, 1
        %s279 = scalar_lea.sflag [#allocation4], %s278
        %s280 = sand.u32 %s47, 1
        %s281 = smul.addr %s280, 112
        %s282 = scalar_lea.vmem [#allocation3], %s281
        %p283 = pneg %p60
        %p284 = pneg %p57
        %p285 = pneg %p81
        %p286 = pneg %p78
        %p287 = pneg %p102
        %p288 = pneg %p99
        %p289 = pneg %p123
        %p290 = pneg %p120
        %p291 = pneg %p144
        %p292 = pneg %p141
        %p293 = pneg %p172
        %p294 = pneg %p169
        %s295 = sand.u32 %s159, 1
        %s296 = scalar_lea.sflag [#allocation5], %s295
        %s297 = sand.u32 %s159, 1
        %s298 = smul.addr %s297, 80
        %s299 = scalar_lea.vmem [#allocation11], %s298
        %v300 = vld [vmem:[%s260] sm:$0xff]
        %v301 = vld [vmem:[%s260 + $0x8] sm:$0xf]
        %v302 = vld [vmem:[%s260 + $0x10] sm:$0xff]
        %v303 = vld [vmem:[%s260 + $0x18] sm:$0xf]
        %v304 = vld [vmem:[%s260 + $0x20] sm:$0xff]
        %v305 = vld [vmem:[%s260 + $0x28] sm:$0xf]
        %v306 = vld [vmem:[%s260 + $0x30] sm:$0xff]
        %v307 = vld [vmem:[%s260 + $0x38] sm:$0xf]
        %v308 = vld [vmem:[%s260 + $0x40] sm:$0xff]
        %v309 = vld [vmem:[%s260 + $0x48] sm:$0xf]
        %s310 = sld [smem:[#allocation7 + $0x4b]]
        %v311 = vstv %s310
        %v312 = vmul.f32 %v311, %v300
        %v313 = vmul.f32 %v311, %v301
        %v314 = vmul.f32 %v311, %v302
        %v315 = vmul.f32 %v311, %v303
        %v316 = vmul.f32 %v311, %v304
        %v317 = vmul.f32 %v311, %v305
        %v318 = vmul.f32 %v311, %v306
        %v319 = vmul.f32 %v311, %v307
        %v320 = vmul.f32 %v311, %v308
        %v321 = vmul.f32 %v311, %v309
        %v322 = vld [vmem:[%s260 + $0x1] sm:$0xff]
        %v323 = vld [vmem:[%s260 + $0x9] sm:$0xf]
        %v324 = vld [vmem:[%s260 + $0x11] sm:$0xff]
        %v325 = vld [vmem:[%s260 + $0x19] sm:$0xf]
        %v326 = vld [vmem:[%s260 + $0x21] sm:$0xff]
        %v327 = vld [vmem:[%s260 + $0x29] sm:$0xf]
        %v328 = vld [vmem:[%s260 + $0x31] sm:$0xff]
        %v329 = vld [vmem:[%s260 + $0x39] sm:$0xf]
        %v330 = vld [vmem:[%s260 + $0x41] sm:$0xff]
        %v331 = vld [vmem:[%s260 + $0x49] sm:$0xf]
        %s332 = sld [smem:[#allocation7 + $0x3d]]
        %v333 = vstv %s332
        %v334 = vmul.f32 %v333, %v322
        %v335 = vmul.f32 %v333, %v323
        %v336 = vmul.f32 %v333, %v324
        %v337 = vmul.f32 %v333, %v325
        %v338 = vmul.f32 %v333, %v326
        %v339 = vmul.f32 %v333, %v327
        %v340 = vmul.f32 %v333, %v328
        %v341 = vmul.f32 %v333, %v329
        %v342 = vmul.f32 %v333, %v330
        %v343 = vmul.f32 %v333, %v331
        %s344 = sld [smem:[#allocation7 + $0x4c]]
        %v345 = vstv %s344
        %v346 = vmul.f32 %v345, %v322
        %v347 = vmul.f32 %v345, %v323
        %v348 = vmul.f32 %v345, %v324
        %v349 = vmul.f32 %v345, %v325
        %v350 = vmul.f32 %v345, %v326
        %v351 = vmul.f32 %v345, %v327
        %v352 = vmul.f32 %v345, %v328
        %v353 = vmul.f32 %v345, %v329
        %v354 = vmul.f32 %v345, %v330
        %v355 = vmul.f32 %v345, %v331
        %v356 = vadd.f32 %v312, %v346
        %v357 = vadd.f32 %v313, %v347
        %v358 = vadd.f32 %v314, %v348
        %v359 = vadd.f32 %v315, %v349
        %v360 = vadd.f32 %v316, %v350
        %v361 = vadd.f32 %v317, %v351
        %v362 = vadd.f32 %v318, %v352
        %v363 = vadd.f32 %v319, %v353
        %v364 = vadd.f32 %v320, %v354
        %v365 = vadd.f32 %v321, %v355
        %v366 = vld [vmem:[%s260 + $0x2] sm:$0xff]
        %v367 = vld [vmem:[%s260 + $0xa] sm:$0xf]
        %v368 = vld [vmem:[%s260 + $0x12] sm:$0xff]
        %v369 = vld [vmem:[%s260 + $0x1a] sm:$0xf]
        %v370 = vld [vmem:[%s260 + $0x22] sm:$0xff]
        %v371 = vld [vmem:[%s260 + $0x2a] sm:$0xf]
        %v372 = vld [vmem:[%s260 + $0x32] sm:$0xff]
        %v373 = vld [vmem:[%s260 + $0x3a] sm:$0xf]
        %v374 = vld [vmem:[%s260 + $0x42] sm:$0xff]
        %v375 = vld [vmem:[%s260 + $0x4a] sm:$0xf]
        %s376 = sld [smem:[#allocation7 + $0x2f]]
        %v377 = vstv %s376
        %v378 = vmul.f32 %v377, %v366
        %v379 = vmul.f32 %v377, %v367
        %v380 = vmul.f32 %v377, %v368
        %v381 = vmul.f32 %v377, %v369
        %v382 = vmul.f32 %v377, %v370
        %v383 = vmul.f32 %v377, %v371
        %v384 = vmul.f32 %v377, %v372
        %v385 = vmul.f32 %v377, %v373
        %v386 = vmul.f32 %v377, %v374
        %v387 = vmul.f32 %v377, %v375
        %s388 = sld [smem:[#allocation7 + $0x3e]]
        %v389 = vstv %s388
        %v390 = vmul.f32 %v389, %v366
        %v391 = vmul.f32 %v389, %v367
        %v392 = vmul.f32 %v389, %v368
        %v393 = vmul.f32 %v389, %v369
        %v394 = vmul.f32 %v389, %v370
        %v395 = vmul.f32 %v389, %v371
        %v396 = vmul.f32 %v389, %v372
        %v397 = vmul.f32 %v389, %v373
        %v398 = vmul.f32 %v389, %v374
        %v399 = vmul.f32 %v389, %v375
        %v400 = vadd.f32 %v334, %v390
        %v401 = vadd.f32 %v335, %v391
        %v402 = vadd.f32 %v336, %v392
        %v403 = vadd.f32 %v337, %v393
        %v404 = vadd.f32 %v338, %v394
        %v405 = vadd.f32 %v339, %v395
        %v406 = vadd.f32 %v340, %v396
        %v407 = vadd.f32 %v341, %v397
        %v408 = vadd.f32 %v342, %v398
        %v409 = vadd.f32 %v343, %v399
        %s410 = sld [smem:[#allocation7 + $0x4d]]
        %v411 = vstv %s410
        %v412 = vmul.f32 %v411, %v366
        %v413 = vmul.f32 %v411, %v367
        %v414 = vmul.f32 %v411, %v368
        %v415 = vmul.f32 %v411, %v369
        %v416 = vmul.f32 %v411, %v370
        %v417 = vmul.f32 %v411, %v371
        %v418 = vmul.f32 %v411, %v372
        %v419 = vmul.f32 %v411, %v373
        %v420 = vmul.f32 %v411, %v374
        %v421 = vmul.f32 %v411, %v375
        %v422 = vadd.f32 %v356, %v412
        %v423 = vadd.f32 %v357, %v413
        %v424 = vadd.f32 %v358, %v414
        %v425 = vadd.f32 %v359, %v415
        %v426 = vadd.f32 %v360, %v416
        %v427 = vadd.f32 %v361, %v417
        %v428 = vadd.f32 %v362, %v418
        %v429 = vadd.f32 %v363, %v419
        %v430 = vadd.f32 %v364, %v420
        %v431 = vadd.f32 %v365, %v421
        %v432 = vld [vmem:[%s260 + $0x3] sm:$0xff]
        %v433 = vld [vmem:[%s260 + $0xb] sm:$0xf]
        %v434 = vld [vmem:[%s260 + $0x13] sm:$0xff]
        %v435 = vld [vmem:[%s260 + $0x1b] sm:$0xf]
        %v436 = vld [vmem:[%s260 + $0x23] sm:$0xff]
        %v437 = vld [vmem:[%s260 + $0x2b] sm:$0xf]
        %v438 = vld [vmem:[%s260 + $0x33] sm:$0xff]
        %v439 = vld [vmem:[%s260 + $0x3b] sm:$0xf]
        %v440 = vld [vmem:[%s260 + $0x43] sm:$0xff]
        %v441 = vld [vmem:[%s260 + $0x4b] sm:$0xf]
        %s442 = sld [smem:[#allocation7 + $0x3f]]
        %v443 = vstv %s442
        %v444 = vmul.f32 %v443, %v432
        %v445 = vmul.f32 %v443, %v433
        %v446 = vmul.f32 %v443, %v434
        %v447 = vmul.f32 %v443, %v435
        %v448 = vmul.f32 %v443, %v436
        %v449 = vmul.f32 %v443, %v437
        %v450 = vmul.f32 %v443, %v438
        %v451 = vmul.f32 %v443, %v439
        %v452 = vmul.f32 %v443, %v440
        %v453 = vmul.f32 %v443, %v441
        %v454 = vadd.f32 %v400, %v444
        %v455 = vadd.f32 %v401, %v445
        %v456 = vadd.f32 %v402, %v446
        %v457 = vadd.f32 %v403, %v447
        %v458 = vadd.f32 %v404, %v448
        %v459 = vadd.f32 %v405, %v449
        %v460 = vadd.f32 %v406, %v450
        %v461 = vadd.f32 %v407, %v451
        %v462 = vadd.f32 %v408, %v452
        %v463 = vadd.f32 %v409, %v453
        %s464 = sld [smem:[#allocation7 + $0x4e]]
        %v465 = vstv %s464
        %v466 = vmul.f32 %v465, %v432
        %v467 = vmul.f32 %v465, %v433
        %v468 = vmul.f32 %v465, %v434
        %v469 = vmul.f32 %v465, %v435
        %v470 = vmul.f32 %v465, %v436
        %v471 = vmul.f32 %v465, %v437
        %v472 = vmul.f32 %v465, %v438
        %v473 = vmul.f32 %v465, %v439
        %v474 = vmul.f32 %v465, %v440
        %v475 = vmul.f32 %v465, %v441
        %v476 = vadd.f32 %v422, %v466
        %v477 = vadd.f32 %v423, %v467
        %v478 = vadd.f32 %v424, %v468
        %v479 = vadd.f32 %v425, %v469
        %v480 = vadd.f32 %v426, %v470
        %v481 = vadd.f32 %v427, %v471
        %v482 = vadd.f32 %v428, %v472
        %v483 = vadd.f32 %v429, %v473
        %v484 = vadd.f32 %v430, %v474
        %v485 = vadd.f32 %v431, %v475
        %v486 = vld [vmem:[%s260 + $0x4] sm:$0xff]
        %v487 = vld [vmem:[%s260 + $0xc] sm:$0xf]
        %v488 = vld [vmem:[%s260 + $0x14] sm:$0xff]
        %v489 = vld [vmem:[%s260 + $0x1c] sm:$0xf]
        %v490 = vld [vmem:[%s260 + $0x24] sm:$0xff]
        %v491 = vld [vmem:[%s260 + $0x2c] sm:$0xf]
        %v492 = vld [vmem:[%s260 + $0x34] sm:$0xff]
        %v493 = vld [vmem:[%s260 + $0x3c] sm:$0xf]
        %v494 = vld [vmem:[%s260 + $0x44] sm:$0xff]
        %v495 = vld [vmem:[%s260 + $0x4c] sm:$0xf]
        %s496 = sld [smem:[#allocation7 + $0x4f]]
        %v497 = vstv %s496
        %v498 = vmul.f32 %v497, %v486
        %v499 = vmul.f32 %v497, %v487
        %v500 = vmul.f32 %v497, %v488
        %v501 = vmul.f32 %v497, %v489
        %v502 = vmul.f32 %v497, %v490
        %v503 = vmul.f32 %v497, %v491
        %v504 = vmul.f32 %v497, %v492
        %v505 = vmul.f32 %v497, %v493
        %v506 = vmul.f32 %v497, %v494
        %v507 = vmul.f32 %v497, %v495
        %v508 = vadd.f32 %v476, %v498
        %v509 = vadd.f32 %v477, %v499
        %v510 = vadd.f32 %v478, %v500
        %v511 = vadd.f32 %v479, %v501
        %v512 = vadd.f32 %v480, %v502
        %v513 = vadd.f32 %v481, %v503
        %v514 = vadd.f32 %v482, %v504
        %v515 = vadd.f32 %v483, %v505
        %v516 = vadd.f32 %v484, %v506
        %v517 = vadd.f32 %v485, %v507
        %s518 = scalar_lea.vmem %s260, 16 [#allocation3]
        %v519 = vld [vmem:[%s518] sm:$0xff]
        %v520 = vld [vmem:[%s518 + $0x8] sm:$0xf]
        %v521 = vld [vmem:[%s518 + $0x10] sm:$0xff]
        %v522 = vld [vmem:[%s518 + $0x18] sm:$0xf]
        %v523 = vld [vmem:[%s518 + $0x20] sm:$0xff]
        %v524 = vld [vmem:[%s518 + $0x28] sm:$0xf]
        %v525 = vld [vmem:[%s518 + $0x30] sm:$0xff]
        %v526 = vld [vmem:[%s518 + $0x38] sm:$0xf]
        %v527 = vld [vmem:[%s518 + $0x40] sm:$0xff]
        %v528 = vld [vmem:[%s518 + $0x48] sm:$0xf]
        %s529 = sld [smem:[#allocation7 + $0x23]]
        %v530 = vstv %s529
        %v531 = vmul.f32 %v530, %v519
        %v532 = vmul.f32 %v530, %v520
        %v533 = vmul.f32 %v530, %v521
        %v534 = vmul.f32 %v530, %v522
        %v535 = vmul.f32 %v530, %v523
        %v536 = vmul.f32 %v530, %v524
        %v537 = vmul.f32 %v530, %v525
        %v538 = vmul.f32 %v530, %v526
        %v539 = vmul.f32 %v530, %v527
        %v540 = vmul.f32 %v530, %v528
        %s541 = sld [smem:[#allocation7 + $0x50]]
        %v542 = vstv %s541
        %v543 = vmul.f32 %v542, %v519
        %v544 = vmul.f32 %v542, %v520
        %v545 = vmul.f32 %v542, %v521
        %v546 = vmul.f32 %v542, %v522
        %v547 = vmul.f32 %v542, %v523
        %v548 = vmul.f32 %v542, %v524
        %v549 = vmul.f32 %v542, %v525
        %v550 = vmul.f32 %v542, %v526
        %v551 = vmul.f32 %v542, %v527
        %v552 = vmul.f32 %v542, %v528
        %v553 = vadd.f32 %v508, %v543
        %v554 = vadd.f32 %v509, %v544
        %v555 = vadd.f32 %v510, %v545
        %v556 = vadd.f32 %v511, %v546
        %v557 = vadd.f32 %v512, %v547
        %v558 = vadd.f32 %v513, %v548
        %v559 = vadd.f32 %v514, %v549
        %v560 = vadd.f32 %v515, %v550
        %v561 = vadd.f32 %v516, %v551
        %v562 = vadd.f32 %v517, %v552
        %v563 = vld [vmem:[%s518 + $0x1] sm:$0xff]
        %v564 = vld [vmem:[%s518 + $0x9] sm:$0xf]
        %v565 = vld [vmem:[%s518 + $0x11] sm:$0xff]
        %v566 = vld [vmem:[%s518 + $0x19] sm:$0xf]
        %v567 = vld [vmem:[%s518 + $0x21] sm:$0xff]
        %v568 = vld [vmem:[%s518 + $0x29] sm:$0xf]
        %v569 = vld [vmem:[%s518 + $0x31] sm:$0xff]
        %v570 = vld [vmem:[%s518 + $0x39] sm:$0xf]
        %v571 = vld [vmem:[%s518 + $0x41] sm:$0xff]
        %v572 = vld [vmem:[%s518 + $0x49] sm:$0xf]
        %s573 = sld [smem:[#allocation7 + $0x15]]
        %v574 = vstv %s573
        %v575 = vmul.f32 %v574, %v563
        %v576 = vmul.f32 %v574, %v564
        %v577 = vmul.f32 %v574, %v565
        %v578 = vmul.f32 %v574, %v566
        %v579 = vmul.f32 %v574, %v567
        %v580 = vmul.f32 %v574, %v568
        %v581 = vmul.f32 %v574, %v569
        %v582 = vmul.f32 %v574, %v570
        %v583 = vmul.f32 %v574, %v571
        %v584 = vmul.f32 %v574, %v572
        %s585 = sld [smem:[#allocation7 + $0x24]]
        %v586 = vstv %s585
        %v587 = vmul.f32 %v586, %v563
        %v588 = vmul.f32 %v586, %v564
        %v589 = vmul.f32 %v586, %v565
        %v590 = vmul.f32 %v586, %v566
        %v591 = vmul.f32 %v586, %v567
        %v592 = vmul.f32 %v586, %v568
        %v593 = vmul.f32 %v586, %v569
        %v594 = vmul.f32 %v586, %v570
        %v595 = vmul.f32 %v586, %v571
        %v596 = vmul.f32 %v586, %v572
        %v597 = vadd.f32 %v531, %v587
        %v598 = vadd.f32 %v532, %v588
        %v599 = vadd.f32 %v533, %v589
        %v600 = vadd.f32 %v534, %v590
        %v601 = vadd.f32 %v535, %v591
        %v602 = vadd.f32 %v536, %v592
        %v603 = vadd.f32 %v537, %v593
        %v604 = vadd.f32 %v538, %v594
        %v605 = vadd.f32 %v539, %v595
        %v606 = vadd.f32 %v540, %v596
        %s607 = sld [smem:[#allocation7 + $0x42]]
        %v608 = vstv %s607
        %v609 = vmul.f32 %v608, %v563
        %v610 = vmul.f32 %v608, %v564
        %v611 = vmul.f32 %v608, %v565
        %v612 = vmul.f32 %v608, %v566
        %v613 = vmul.f32 %v608, %v567
        %v614 = vmul.f32 %v608, %v568
        %v615 = vmul.f32 %v608, %v569
        %v616 = vmul.f32 %v608, %v570
        %v617 = vmul.f32 %v608, %v571
        %v618 = vmul.f32 %v608, %v572
        %v619 = vadd.f32 %v454, %v609
        %v620 = vadd.f32 %v455, %v610
        %v621 = vadd.f32 %v456, %v611
        %v622 = vadd.f32 %v457, %v612
        %v623 = vadd.f32 %v458, %v613
        %v624 = vadd.f32 %v459, %v614
        %v625 = vadd.f32 %v460, %v615
        %v626 = vadd.f32 %v461, %v616
        %v627 = vadd.f32 %v462, %v617
        %v628 = vadd.f32 %v463, %v618
        %s629 = sld [smem:[#allocation7 + $0x51]]
        %v630 = vstv %s629
        %v631 = vmul.f32 %v630, %v563
        %v632 = vmul.f32 %v630, %v564
        %v633 = vmul.f32 %v630, %v565
        %v634 = vmul.f32 %v630, %v566
        %v635 = vmul.f32 %v630, %v567
        %v636 = vmul.f32 %v630, %v568
        %v637 = vmul.f32 %v630, %v569
        %v638 = vmul.f32 %v630, %v570
        %v639 = vmul.f32 %v630, %v571
        %v640 = vmul.f32 %v630, %v572
        %v641 = vadd.f32 %v553, %v631
        %v642 = vadd.f32 %v554, %v632
        %v643 = vadd.f32 %v555, %v633
        %v644 = vadd.f32 %v556, %v634
        %v645 = vadd.f32 %v557, %v635
        %v646 = vadd.f32 %v558, %v636
        %v647 = vadd.f32 %v559, %v637
        %v648 = vadd.f32 %v560, %v638
        %v649 = vadd.f32 %v561, %v639
        %v650 = vadd.f32 %v562, %v640
        %v651 = vld [vmem:[%s518 + $0x2] sm:$0xff]
        %v652 = vld [vmem:[%s518 + $0xa] sm:$0xf]
        %v653 = vld [vmem:[%s518 + $0x12] sm:$0xff]
        %v654 = vld [vmem:[%s518 + $0x1a] sm:$0xf]
        %v655 = vld [vmem:[%s518 + $0x22] sm:$0xff]
        %v656 = vld [vmem:[%s518 + $0x2a] sm:$0xf]
        %v657 = vld [vmem:[%s518 + $0x32] sm:$0xff]
        %v658 = vld [vmem:[%s518 + $0x3a] sm:$0xf]
        %v659 = vld [vmem:[%s518 + $0x42] sm:$0xff]
        %v660 = vld [vmem:[%s518 + $0x4a] sm:$0xf]
        %s661 = sld [smem:[#allocation7 + $0x7]]
        %v662 = vstv %s661
        %v663 = vmul.f32 %v662, %v651
        %v664 = vmul.f32 %v662, %v652
        %v665 = vmul.f32 %v662, %v653
        %v666 = vmul.f32 %v662, %v654
        %v667 = vmul.f32 %v662, %v655
        %v668 = vmul.f32 %v662, %v656
        %v669 = vmul.f32 %v662, %v657
        %v670 = vmul.f32 %v662, %v658
        %v671 = vmul.f32 %v662, %v659
        %v672 = vmul.f32 %v662, %v660
        %s673 = sld [smem:[#allocation7 + $0x16]]
        %v674 = vstv %s673
        %v675 = vmul.f32 %v674, %v651
        %v676 = vmul.f32 %v674, %v652
        %v677 = vmul.f32 %v674, %v653
        %v678 = vmul.f32 %v674, %v654
        %v679 = vmul.f32 %v674, %v655
        %v680 = vmul.f32 %v674, %v656
        %v681 = vmul.f32 %v674, %v657
        %v682 = vmul.f32 %v674, %v658
        %v683 = vmul.f32 %v674, %v659
        %v684 = vmul.f32 %v674, %v660
        %v685 = vadd.f32 %v575, %v675
        %v686 = vadd.f32 %v576, %v676
        %v687 = vadd.f32 %v577, %v677
        %v688 = vadd.f32 %v578, %v678
        %v689 = vadd.f32 %v579, %v679
        %v690 = vadd.f32 %v580, %v680
        %v691 = vadd.f32 %v581, %v681
        %v692 = vadd.f32 %v582, %v682
        %v693 = vadd.f32 %v583, %v683
        %v694 = vadd.f32 %v584, %v684
        %s695 = sld [smem:[#allocation7 + $0x25]]
        %v696 = vstv %s695
        %v697 = vmul.f32 %v696, %v651
        %v698 = vmul.f32 %v696, %v652
        %v699 = vmul.f32 %v696, %v653
        %v700 = vmul.f32 %v696, %v654
        %v701 = vmul.f32 %v696, %v655
        %v702 = vmul.f32 %v696, %v656
        %v703 = vmul.f32 %v696, %v657
        %v704 = vmul.f32 %v696, %v658
        %v705 = vmul.f32 %v696, %v659
        %v706 = vmul.f32 %v696, %v660
        %v707 = vadd.f32 %v597, %v697
        %v708 = vadd.f32 %v598, %v698
        %v709 = vadd.f32 %v599, %v699
        %v710 = vadd.f32 %v600, %v700
        %v711 = vadd.f32 %v601, %v701
        %v712 = vadd.f32 %v602, %v702
        %v713 = vadd.f32 %v603, %v703
        %v714 = vadd.f32 %v604, %v704
        %v715 = vadd.f32 %v605, %v705
        %v716 = vadd.f32 %v606, %v706
        %s717 = sld [smem:[#allocation7 + $0x34]]
        %v718 = vstv %s717
        %v719 = vmul.f32 %v718, %v651
        %v720 = vmul.f32 %v718, %v652
        %v721 = vmul.f32 %v718, %v653
        %v722 = vmul.f32 %v718, %v654
        %v723 = vmul.f32 %v718, %v655
        %v724 = vmul.f32 %v718, %v656
        %v725 = vmul.f32 %v718, %v657
        %v726 = vmul.f32 %v718, %v658
        %v727 = vmul.f32 %v718, %v659
        %v728 = vmul.f32 %v718, %v660
        %v729 = vadd.f32 %v378, %v719
        %v730 = vadd.f32 %v379, %v720
        %v731 = vadd.f32 %v380, %v721
        %v732 = vadd.f32 %v381, %v722
        %v733 = vadd.f32 %v382, %v723
        %v734 = vadd.f32 %v383, %v724
        %v735 = vadd.f32 %v384, %v725
        %v736 = vadd.f32 %v385, %v726
        %v737 = vadd.f32 %v386, %v727
        %v738 = vadd.f32 %v387, %v728
        %s739 = sld [smem:[#allocation7 + $0x43]]
        %v740 = vstv %s739
        %v741 = vmul.f32 %v740, %v651
        %v742 = vmul.f32 %v740, %v652
        %v743 = vmul.f32 %v740, %v653
        %v744 = vmul.f32 %v740, %v654
        %v745 = vmul.f32 %v740, %v655
        %v746 = vmul.f32 %v740, %v656
        %v747 = vmul.f32 %v740, %v657
        %v748 = vmul.f32 %v740, %v658
        %v749 = vmul.f32 %v740, %v659
        %v750 = vmul.f32 %v740, %v660
        %v751 = vadd.f32 %v619, %v741
        %v752 = vadd.f32 %v620, %v742
        %v753 = vadd.f32 %v621, %v743
        %v754 = vadd.f32 %v622, %v744
        %v755 = vadd.f32 %v623, %v745
        %v756 = vadd.f32 %v624, %v746
        %v757 = vadd.f32 %v625, %v747
        %v758 = vadd.f32 %v626, %v748
        %v759 = vadd.f32 %v627, %v749
        %v760 = vadd.f32 %v628, %v750
        %s761 = sld [smem:[#allocation7 + $0x52]]
        %v762 = vstv %s761
        %v763 = vmul.f32 %v762, %v651
        %v764 = vmul.f32 %v762, %v652
        %v765 = vmul.f32 %v762, %v653
        %v766 = vmul.f32 %v762, %v654
        %v767 = vmul.f32 %v762, %v655
        %v768 = vmul.f32 %v762, %v656
        %v769 = vmul.f32 %v762, %v657
        %v770 = vmul.f32 %v762, %v658
        %v771 = vmul.f32 %v762, %v659
        %v772 = vmul.f32 %v762, %v660
        %v773 = vadd.f32 %v641, %v763
        %v774 = vadd.f32 %v642, %v764
        %v775 = vadd.f32 %v643, %v765
        %v776 = vadd.f32 %v644, %v766
        %v777 = vadd.f32 %v645, %v767
        %v778 = vadd.f32 %v646, %v768
        %v779 = vadd.f32 %v647, %v769
        %v780 = vadd.f32 %v648, %v770
        %v781 = vadd.f32 %v649, %v771
        %v782 = vadd.f32 %v650, %v772
        %v783 = vld [vmem:[%s518 + $0x3] sm:$0xff]
        %v784 = vld [vmem:[%s518 + $0xb] sm:$0xf]
        %v785 = vld [vmem:[%s518 + $0x13] sm:$0xff]
        %v786 = vld [vmem:[%s518 + $0x1b] sm:$0xf]
        %v787 = vld [vmem:[%s518 + $0x23] sm:$0xff]
        %v788 = vld [vmem:[%s518 + $0x2b] sm:$0xf]
        %v789 = vld [vmem:[%s518 + $0x33] sm:$0xff]
        %v790 = vld [vmem:[%s518 + $0x3b] sm:$0xf]
        %v791 = vld [vmem:[%s518 + $0x43] sm:$0xff]
        %v792 = vld [vmem:[%s518 + $0x4b] sm:$0xf]
        %s793 = sld [smem:[#allocation7 + $0x17]]
        %v794 = vstv %s793
        %v795 = vmul.f32 %v794, %v783
        %v796 = vmul.f32 %v794, %v784
        %v797 = vmul.f32 %v794, %v785
        %v798 = vmul.f32 %v794, %v786
        %v799 = vmul.f32 %v794, %v787
        %v800 = vmul.f32 %v794, %v788
        %v801 = vmul.f32 %v794, %v789
        %v802 = vmul.f32 %v794, %v790
        %v803 = vmul.f32 %v794, %v791
        %v804 = vmul.f32 %v794, %v792
        %v805 = vadd.f32 %v685, %v795
        %v806 = vadd.f32 %v686, %v796
        %v807 = vadd.f32 %v687, %v797
        %v808 = vadd.f32 %v688, %v798
        %v809 = vadd.f32 %v689, %v799
        %v810 = vadd.f32 %v690, %v800
        %v811 = vadd.f32 %v691, %v801
        %v812 = vadd.f32 %v692, %v802
        %v813 = vadd.f32 %v693, %v803
        %v814 = vadd.f32 %v694, %v804
        %s815 = sld [smem:[#allocation7 + $0x26]]
        %v816 = vstv %s815
        %v817 = vmul.f32 %v816, %v783
        %v818 = vmul.f32 %v816, %v784
        %v819 = vmul.f32 %v816, %v785
        %v820 = vmul.f32 %v816, %v786
        %v821 = vmul.f32 %v816, %v787
        %v822 = vmul.f32 %v816, %v788
        %v823 = vmul.f32 %v816, %v789
        %v824 = vmul.f32 %v816, %v790
        %v825 = vmul.f32 %v816, %v791
        %v826 = vmul.f32 %v816, %v792
        %v827 = vadd.f32 %v707, %v817
        %v828 = vadd.f32 %v708, %v818
        %v829 = vadd.f32 %v709, %v819
        %v830 = vadd.f32 %v710, %v820
        %v831 = vadd.f32 %v711, %v821
        %v832 = vadd.f32 %v712, %v822
        %v833 = vadd.f32 %v713, %v823
        %v834 = vadd.f32 %v714, %v824
        %v835 = vadd.f32 %v715, %v825
        %v836 = vadd.f32 %v716, %v826
        %s837 = sld [smem:[#allocation7 + $0x44]]
        %v838 = vstv %s837
        %v839 = vmul.f32 %v838, %v783
        %v840 = vmul.f32 %v838, %v784
        %v841 = vmul.f32 %v838, %v785
        %v842 = vmul.f32 %v838, %v786
        %v843 = vmul.f32 %v838, %v787
        %v844 = vmul.f32 %v838, %v788
        %v845 = vmul.f32 %v838, %v789
        %v846 = vmul.f32 %v838, %v790
        %v847 = vmul.f32 %v838, %v791
        %v848 = vmul.f32 %v838, %v792
        %v849 = vadd.f32 %v751, %v839
        %v850 = vadd.f32 %v752, %v840
        %v851 = vadd.f32 %v753, %v841
        %v852 = vadd.f32 %v754, %v842
        %v853 = vadd.f32 %v755, %v843
        %v854 = vadd.f32 %v756, %v844
        %v855 = vadd.f32 %v757, %v845
        %v856 = vadd.f32 %v758, %v846
        %v857 = vadd.f32 %v759, %v847
        %v858 = vadd.f32 %v760, %v848
        %s859 = sld [smem:[#allocation7 + $0x53]]
        %v860 = vstv %s859
        %v861 = vmul.f32 %v860, %v783
        %v862 = vmul.f32 %v860, %v784
        %v863 = vmul.f32 %v860, %v785
        %v864 = vmul.f32 %v860, %v786
        %v865 = vmul.f32 %v860, %v787
        %v866 = vmul.f32 %v860, %v788
        %v867 = vmul.f32 %v860, %v789
        %v868 = vmul.f32 %v860, %v790
        %v869 = vmul.f32 %v860, %v791
        %v870 = vmul.f32 %v860, %v792
        %v871 = vadd.f32 %v773, %v861
        %v872 = vadd.f32 %v774, %v862
        %v873 = vadd.f32 %v775, %v863
        %v874 = vadd.f32 %v776, %v864
        %v875 = vadd.f32 %v777, %v865
        %v876 = vadd.f32 %v778, %v866
        %v877 = vadd.f32 %v779, %v867
        %v878 = vadd.f32 %v780, %v868
        %v879 = vadd.f32 %v781, %v869
        %v880 = vadd.f32 %v782, %v870
        %v881 = vld [vmem:[%s518 + $0x4] sm:$0xff]
        %v882 = vld [vmem:[%s518 + $0xc] sm:$0xf]
        %v883 = vld [vmem:[%s518 + $0x14] sm:$0xff]
        %v884 = vld [vmem:[%s518 + $0x1c] sm:$0xf]
        %v885 = vld [vmem:[%s518 + $0x24] sm:$0xff]
        %v886 = vld [vmem:[%s518 + $0x2c] sm:$0xf]
        %v887 = vld [vmem:[%s518 + $0x34] sm:$0xff]
        %v888 = vld [vmem:[%s518 + $0x3c] sm:$0xf]
        %v889 = vld [vmem:[%s518 + $0x44] sm:$0xff]
        %v890 = vld [vmem:[%s518 + $0x4c] sm:$0xf]
        %s891 = sld [smem:[#allocation7 + $0x27]]
        %v892 = vstv %s891
        %v893 = vmul.f32 %v892, %v881
        %v894 = vmul.f32 %v892, %v882
        %v895 = vmul.f32 %v892, %v883
        %v896 = vmul.f32 %v892, %v884
        %v897 = vmul.f32 %v892, %v885
        %v898 = vmul.f32 %v892, %v886
        %v899 = vmul.f32 %v892, %v887
        %v900 = vmul.f32 %v892, %v888
        %v901 = vmul.f32 %v892, %v889
        %v902 = vmul.f32 %v892, %v890
        %v903 = vadd.f32 %v827, %v893
        %v904 = vadd.f32 %v828, %v894
        %v905 = vadd.f32 %v829, %v895
        %v906 = vadd.f32 %v830, %v896
        %v907 = vadd.f32 %v831, %v897
        %v908 = vadd.f32 %v832, %v898
        %v909 = vadd.f32 %v833, %v899
        %v910 = vadd.f32 %v834, %v900
        %v911 = vadd.f32 %v835, %v901
        %v912 = vadd.f32 %v836, %v902
        %s913 = sld [smem:[#allocation7 + $0x54]]
        %v914 = vstv %s913
        %v915 = vmul.f32 %v914, %v881
        %v916 = vmul.f32 %v914, %v882
        %v917 = vmul.f32 %v914, %v883
        %v918 = vmul.f32 %v914, %v884
        %v919 = vmul.f32 %v914, %v885
        %v920 = vmul.f32 %v914, %v886
        %v921 = vmul.f32 %v914, %v887
        %v922 = vmul.f32 %v914, %v888
        %v923 = vmul.f32 %v914, %v889
        %v924 = vmul.f32 %v914, %v890
        %v925 = vadd.f32 %v871, %v915
        %v926 = vadd.f32 %v872, %v916
        %v927 = vadd.f32 %v873, %v917
        %v928 = vadd.f32 %v874, %v918
        %v929 = vadd.f32 %v875, %v919
        %v930 = vadd.f32 %v876, %v920
        %v931 = vadd.f32 %v877, %v921
        %v932 = vadd.f32 %v878, %v922
        %v933 = vadd.f32 %v879, %v923
        %v934 = vadd.f32 %v880, %v924
        %s935 = scalar_lea.vmem %s260, 32 [#allocation3]
        %v936 = vld [vmem:[%s935] sm:$0xff]
        %v937 = vld [vmem:[%s935 + $0x8] sm:$0xf]
        %v938 = vld [vmem:[%s935 + $0x10] sm:$0xff]
        %v939 = vld [vmem:[%s935 + $0x18] sm:$0xf]
        %v940 = vld [vmem:[%s935 + $0x20] sm:$0xff]
        %v941 = vld [vmem:[%s935 + $0x28] sm:$0xf]
        %v942 = vld [vmem:[%s935 + $0x30] sm:$0xff]
        %v943 = vld [vmem:[%s935 + $0x38] sm:$0xf]
        %v944 = vld [vmem:[%s935 + $0x40] sm:$0xff]
        %v945 = vld [vmem:[%s935 + $0x48] sm:$0xf]
        %s946 = sld [smem:[#allocation7 + $0x55]]
        %v947 = vstv %s946
        %v948 = vmul.f32 %v947, %v936
        %v949 = vmul.f32 %v947, %v937
        %v950 = vmul.f32 %v947, %v938
        %v951 = vmul.f32 %v947, %v939
        %v952 = vmul.f32 %v947, %v940
        %v953 = vmul.f32 %v947, %v941
        %v954 = vmul.f32 %v947, %v942
        %v955 = vmul.f32 %v947, %v943
        %v956 = vmul.f32 %v947, %v944
        %v957 = vmul.f32 %v947, %v945
        %v958 = vadd.f32 %v925, %v948
        %v959 = vadd.f32 %v926, %v949
        %v960 = vadd.f32 %v927, %v950
        %v961 = vadd.f32 %v928, %v951
        %v962 = vadd.f32 %v929, %v952
        %v963 = vadd.f32 %v930, %v953
        %v964 = vadd.f32 %v931, %v954
        %v965 = vadd.f32 %v932, %v955
        %v966 = vadd.f32 %v933, %v956
        %v967 = vadd.f32 %v934, %v957
        %v968 = vld [vmem:[%s935 + $0x1] sm:$0xff]
        %v969 = vld [vmem:[%s935 + $0x9] sm:$0xf]
        %v970 = vld [vmem:[%s935 + $0x11] sm:$0xff]
        %v971 = vld [vmem:[%s935 + $0x19] sm:$0xf]
        %v972 = vld [vmem:[%s935 + $0x21] sm:$0xff]
        %v973 = vld [vmem:[%s935 + $0x29] sm:$0xf]
        %v974 = vld [vmem:[%s935 + $0x31] sm:$0xff]
        %v975 = vld [vmem:[%s935 + $0x39] sm:$0xf]
        %v976 = vld [vmem:[%s935 + $0x41] sm:$0xff]
        %v977 = vld [vmem:[%s935 + $0x49] sm:$0xf]
        %s978 = sld [smem:[#allocation7 + $0x47]]
        %v979 = vstv %s978
        %v980 = vmul.f32 %v979, %v968
        %v981 = vmul.f32 %v979, %v969
        %v982 = vmul.f32 %v979, %v970
        %v983 = vmul.f32 %v979, %v971
        %v984 = vmul.f32 %v979, %v972
        %v985 = vmul.f32 %v979, %v973
        %v986 = vmul.f32 %v979, %v974
        %v987 = vmul.f32 %v979, %v975
        %v988 = vmul.f32 %v979, %v976
        %v989 = vmul.f32 %v979, %v977
        %v990 = vadd.f32 %v849, %v980
        %v991 = vadd.f32 %v850, %v981
        %v992 = vadd.f32 %v851, %v982
        %v993 = vadd.f32 %v852, %v983
        %v994 = vadd.f32 %v853, %v984
        %v995 = vadd.f32 %v854, %v985
        %v996 = vadd.f32 %v855, %v986
        %v997 = vadd.f32 %v856, %v987
        %v998 = vadd.f32 %v857, %v988
        %v999 = vadd.f32 %v858, %v989
        %s1000 = sld [smem:[#allocation7 + $0x56]]
        %v1001 = vstv %s1000
        %v1002 = vmul.f32 %v1001, %v968
        %v1003 = vmul.f32 %v1001, %v969
        %v1004 = vmul.f32 %v1001, %v970
        %v1005 = vmul.f32 %v1001, %v971
        %v1006 = vmul.f32 %v1001, %v972
        %v1007 = vmul.f32 %v1001, %v973
        %v1008 = vmul.f32 %v1001, %v974
        %v1009 = vmul.f32 %v1001, %v975
        %v1010 = vmul.f32 %v1001, %v976
        %v1011 = vmul.f32 %v1001, %v977
        %v1012 = vadd.f32 %v958, %v1002
        %v1013 = vadd.f32 %v959, %v1003
        %v1014 = vadd.f32 %v960, %v1004
        %v1015 = vadd.f32 %v961, %v1005
        %v1016 = vadd.f32 %v962, %v1006
        %v1017 = vadd.f32 %v963, %v1007
        %v1018 = vadd.f32 %v964, %v1008
        %v1019 = vadd.f32 %v965, %v1009
        %v1020 = vadd.f32 %v966, %v1010
        %v1021 = vadd.f32 %v967, %v1011
        %v1022 = vld [vmem:[%s935 + $0x2] sm:$0xff]
        %v1023 = vld [vmem:[%s935 + $0xa] sm:$0xf]
        %v1024 = vld [vmem:[%s935 + $0x12] sm:$0xff]
        %v1025 = vld [vmem:[%s935 + $0x1a] sm:$0xf]
        %v1026 = vld [vmem:[%s935 + $0x22] sm:$0xff]
        %v1027 = vld [vmem:[%s935 + $0x2a] sm:$0xf]
        %v1028 = vld [vmem:[%s935 + $0x32] sm:$0xff]
        %v1029 = vld [vmem:[%s935 + $0x3a] sm:$0xf]
        %v1030 = vld [vmem:[%s935 + $0x42] sm:$0xff]
        %v1031 = vld [vmem:[%s935 + $0x4a] sm:$0xf]
        %s1032 = sld [smem:[#allocation7 + $0x39]]
        %v1033 = vstv %s1032
        %v1034 = vmul.f32 %v1033, %v1022
        %v1035 = vmul.f32 %v1033, %v1023
        %v1036 = vmul.f32 %v1033, %v1024
        %v1037 = vmul.f32 %v1033, %v1025
        %v1038 = vmul.f32 %v1033, %v1026
        %v1039 = vmul.f32 %v1033, %v1027
        %v1040 = vmul.f32 %v1033, %v1028
        %v1041 = vmul.f32 %v1033, %v1029
        %v1042 = vmul.f32 %v1033, %v1030
        %v1043 = vmul.f32 %v1033, %v1031
        %v1044 = vadd.f32 %v729, %v1034
        %v1045 = vadd.f32 %v730, %v1035
        %v1046 = vadd.f32 %v731, %v1036
        %v1047 = vadd.f32 %v732, %v1037
        %v1048 = vadd.f32 %v733, %v1038
        %v1049 = vadd.f32 %v734, %v1039
        %v1050 = vadd.f32 %v735, %v1040
        %v1051 = vadd.f32 %v736, %v1041
        %v1052 = vadd.f32 %v737, %v1042
        %v1053 = vadd.f32 %v738, %v1043
        %s1054 = sld [smem:[#allocation7 + $0x48]]
        %v1055 = vstv %s1054
        %v1056 = vmul.f32 %v1055, %v1022
        %v1057 = vmul.f32 %v1055, %v1023
        %v1058 = vmul.f32 %v1055, %v1024
        %v1059 = vmul.f32 %v1055, %v1025
        %v1060 = vmul.f32 %v1055, %v1026
        %v1061 = vmul.f32 %v1055, %v1027
        %v1062 = vmul.f32 %v1055, %v1028
        %v1063 = vmul.f32 %v1055, %v1029
        %v1064 = vmul.f32 %v1055, %v1030
        %v1065 = vmul.f32 %v1055, %v1031
        %v1066 = vadd.f32 %v990, %v1056
        %v1067 = vadd.f32 %v991, %v1057
        %v1068 = vadd.f32 %v992, %v1058
        %v1069 = vadd.f32 %v993, %v1059
        %v1070 = vadd.f32 %v994, %v1060
        %v1071 = vadd.f32 %v995, %v1061
        %v1072 = vadd.f32 %v996, %v1062
        %v1073 = vadd.f32 %v997, %v1063
        %v1074 = vadd.f32 %v998, %v1064
        %v1075 = vadd.f32 %v999, %v1065
        %s1076 = sld [smem:[#allocation7 + $0x57]]
        %v1077 = vstv %s1076
        %v1078 = vmul.f32 %v1077, %v1022
        %v1079 = vmul.f32 %v1077, %v1023
        %v1080 = vmul.f32 %v1077, %v1024
        %v1081 = vmul.f32 %v1077, %v1025
        %v1082 = vmul.f32 %v1077, %v1026
        %v1083 = vmul.f32 %v1077, %v1027
        %v1084 = vmul.f32 %v1077, %v1028
        %v1085 = vmul.f32 %v1077, %v1029
        %v1086 = vmul.f32 %v1077, %v1030
        %v1087 = vmul.f32 %v1077, %v1031
        %v1088 = vadd.f32 %v1012, %v1078
        %v1089 = vadd.f32 %v1013, %v1079
        %v1090 = vadd.f32 %v1014, %v1080
        %v1091 = vadd.f32 %v1015, %v1081
        %v1092 = vadd.f32 %v1016, %v1082
        %v1093 = vadd.f32 %v1017, %v1083
        %v1094 = vadd.f32 %v1018, %v1084
        %v1095 = vadd.f32 %v1019, %v1085
        %v1096 = vadd.f32 %v1020, %v1086
        %v1097 = vadd.f32 %v1021, %v1087
        %v1098 = vld [vmem:[%s935 + $0x3] sm:$0xff]
        %v1099 = vld [vmem:[%s935 + $0xb] sm:$0xf]
        %v1100 = vld [vmem:[%s935 + $0x13] sm:$0xff]
        %v1101 = vld [vmem:[%s935 + $0x1b] sm:$0xf]
        %v1102 = vld [vmem:[%s935 + $0x23] sm:$0xff]
        %v1103 = vld [vmem:[%s935 + $0x2b] sm:$0xf]
        %v1104 = vld [vmem:[%s935 + $0x33] sm:$0xff]
        %v1105 = vld [vmem:[%s935 + $0x3b] sm:$0xf]
        %v1106 = vld [vmem:[%s935 + $0x43] sm:$0xff]
        %v1107 = vld [vmem:[%s935 + $0x4b] sm:$0xf]
        %s1108 = sld [smem:[#allocation7 + $0x49]]
        %v1109 = vstv %s1108
        %v1110 = vmul.f32 %v1109, %v1098
        %v1111 = vmul.f32 %v1109, %v1099
        %v1112 = vmul.f32 %v1109, %v1100
        %v1113 = vmul.f32 %v1109, %v1101
        %v1114 = vmul.f32 %v1109, %v1102
        %v1115 = vmul.f32 %v1109, %v1103
        %v1116 = vmul.f32 %v1109, %v1104
        %v1117 = vmul.f32 %v1109, %v1105
        %v1118 = vmul.f32 %v1109, %v1106
        %v1119 = vmul.f32 %v1109, %v1107
        %v1120 = vadd.f32 %v1066, %v1110
        %v1121 = vadd.f32 %v1067, %v1111
        %v1122 = vadd.f32 %v1068, %v1112
        %v1123 = vadd.f32 %v1069, %v1113
        %v1124 = vadd.f32 %v1070, %v1114
        %v1125 = vadd.f32 %v1071, %v1115
        %v1126 = vadd.f32 %v1072, %v1116
        %v1127 = vadd.f32 %v1073, %v1117
        %v1128 = vadd.f32 %v1074, %v1118
        %v1129 = vadd.f32 %v1075, %v1119
        %s1130 = sld [smem:[#allocation7 + $0x58]]
        %v1131 = vstv %s1130
        %v1132 = vmul.f32 %v1131, %v1098
        %v1133 = vmul.f32 %v1131, %v1099
        %v1134 = vmul.f32 %v1131, %v1100
        %v1135 = vmul.f32 %v1131, %v1101
        %v1136 = vmul.f32 %v1131, %v1102
        %v1137 = vmul.f32 %v1131, %v1103
        %v1138 = vmul.f32 %v1131, %v1104
        %v1139 = vmul.f32 %v1131, %v1105
        %v1140 = vmul.f32 %v1131, %v1106
        %v1141 = vmul.f32 %v1131, %v1107
        %v1142 = vadd.f32 %v1088, %v1132
        %v1143 = vadd.f32 %v1089, %v1133
        %v1144 = vadd.f32 %v1090, %v1134
        %v1145 = vadd.f32 %v1091, %v1135
        %v1146 = vadd.f32 %v1092, %v1136
        %v1147 = vadd.f32 %v1093, %v1137
        %v1148 = vadd.f32 %v1094, %v1138
        %v1149 = vadd.f32 %v1095, %v1139
        %v1150 = vadd.f32 %v1096, %v1140
        %v1151 = vadd.f32 %v1097, %v1141
        %v1152 = vld [vmem:[%s935 + $0x4] sm:$0xff]
        %v1153 = vld [vmem:[%s935 + $0xc] sm:$0xf]
        %v1154 = vld [vmem:[%s935 + $0x14] sm:$0xff]
        %v1155 = vld [vmem:[%s935 + $0x1c] sm:$0xf]
        %v1156 = vld [vmem:[%s935 + $0x24] sm:$0xff]
        %v1157 = vld [vmem:[%s935 + $0x2c] sm:$0xf]
        %v1158 = vld [vmem:[%s935 + $0x34] sm:$0xff]
        %v1159 = vld [vmem:[%s935 + $0x3c] sm:$0xf]
        %v1160 = vld [vmem:[%s935 + $0x44] sm:$0xff]
        %v1161 = vld [vmem:[%s935 + $0x4c] sm:$0xf]
        %s1162 = sld [smem:[#allocation7 + $0x59]]
        %v1163 = vstv %s1162
        %v1164 = vmul.f32 %v1163, %v1152
        %v1165 = vmul.f32 %v1163, %v1153
        %v1166 = vmul.f32 %v1163, %v1154
        %v1167 = vmul.f32 %v1163, %v1155
        %v1168 = vmul.f32 %v1163, %v1156
        %v1169 = vmul.f32 %v1163, %v1157
        %v1170 = vmul.f32 %v1163, %v1158
        %v1171 = vmul.f32 %v1163, %v1159
        %v1172 = vmul.f32 %v1163, %v1160
        %v1173 = vmul.f32 %v1163, %v1161
        %v1174 = vadd.f32 %v1142, %v1164
        %v1175 = vadd.f32 %v1143, %v1165
        %v1176 = vadd.f32 %v1144, %v1166
        %v1177 = vadd.f32 %v1145, %v1167
        %v1178 = vadd.f32 %v1146, %v1168
        %v1179 = vadd.f32 %v1147, %v1169
        %v1180 = vadd.f32 %v1148, %v1170
        %v1181 = vadd.f32 %v1149, %v1171
        %v1182 = vadd.f32 %v1150, %v1172
        %v1183 = vadd.f32 %v1151, %v1173
        %s1184 = sld [smem:[#allocation2]]
        %v1185 = vstv %s1184
        %s1186 = sld [smem:[#allocation10]]
        %s1187 = sld [smem:[#allocation8]]
        %v1188 = vstv %s1187
        %v1189 = vadd.f32 %v663, %v1188
        %v1190 = vadd.f32 %v664, %v1188
        %v1191 = vadd.f32 %v665, %v1188
        %v1192 = vadd.f32 %v666, %v1188
        %v1193 = vadd.f32 %v667, %v1188
        %v1194 = vadd.f32 %v668, %v1188
        %v1195 = vadd.f32 %v669, %v1188
        %v1196 = vadd.f32 %v670, %v1188
        %v1197 = vadd.f32 %v671, %v1188
        %v1198 = vadd.f32 %v672, %v1188
        %v1199 = vmax.f32 %v1189, 0.0
        %v1200 = vmax.f32 %v1190, 0.0
        %v1201 = vmax.f32 %v1191, 0.0
        %v1202 = vmax.f32 %v1192, 0.0
        %v1203 = vmax.f32 %v1193, 0.0
        %v1204 = vmax.f32 %v1194, 0.0
        %v1205 = vmax.f32 %v1195, 0.0
        %v1206 = vmax.f32 %v1196, 0.0
        %v1207 = vmax.f32 %v1197, 0.0
        %v1208 = vmax.f32 %v1198, 0.0
        %v1209 = vstv %s1186
        %v1210 = vmul.f32 %v1209, %v1199
        %v1211 = vmul.f32 %v1209, %v1200
        %v1212 = vmul.f32 %v1209, %v1201
        %v1213 = vmul.f32 %v1209, %v1202
        %v1214 = vmul.f32 %v1209, %v1203
        %v1215 = vmul.f32 %v1209, %v1204
        %v1216 = vmul.f32 %v1209, %v1205
        %v1217 = vmul.f32 %v1209, %v1206
        %v1218 = vmul.f32 %v1209, %v1207
        %v1219 = vmul.f32 %v1209, %v1208
        %v1220 = vadd.f32 %v1185, %v1210
        %v1221 = vadd.f32 %v1185, %v1211
        %v1222 = vadd.f32 %v1185, %v1212
        %v1223 = vadd.f32 %v1185, %v1213
        %v1224 = vadd.f32 %v1185, %v1214
        %v1225 = vadd.f32 %v1185, %v1215
        %v1226 = vadd.f32 %v1185, %v1216
        %v1227 = vadd.f32 %v1185, %v1217
        %v1228 = vadd.f32 %v1185, %v1218
        %v1229 = vadd.f32 %v1185, %v1219
        %s1230 = sld [smem:[#allocation10 + $0x1]]
        %s1231 = sld [smem:[#allocation8 + $0x1]]
        %v1232 = vstv %s1231
        %v1233 = vadd.f32 %v805, %v1232
        %v1234 = vadd.f32 %v806, %v1232
        %v1235 = vadd.f32 %v807, %v1232
        %v1236 = vadd.f32 %v808, %v1232
        %v1237 = vadd.f32 %v809, %v1232
        %v1238 = vadd.f32 %v810, %v1232
        %v1239 = vadd.f32 %v811, %v1232
        %v1240 = vadd.f32 %v812, %v1232
        %v1241 = vadd.f32 %v813, %v1232
        %v1242 = vadd.f32 %v814, %v1232
        %v1243 = vmax.f32 %v1233, 0.0
        %v1244 = vmax.f32 %v1234, 0.0
        %v1245 = vmax.f32 %v1235, 0.0
        %v1246 = vmax.f32 %v1236, 0.0
        %v1247 = vmax.f32 %v1237, 0.0
        %v1248 = vmax.f32 %v1238, 0.0
        %v1249 = vmax.f32 %v1239, 0.0
        %v1250 = vmax.f32 %v1240, 0.0
        %v1251 = vmax.f32 %v1241, 0.0
        %v1252 = vmax.f32 %v1242, 0.0
        %v1253 = vstv %s1230
        %v1254 = vmul.f32 %v1253, %v1243
        %v1255 = vmul.f32 %v1253, %v1244
        %v1256 = vmul.f32 %v1253, %v1245
        %v1257 = vmul.f32 %v1253, %v1246
        %v1258 = vmul.f32 %v1253, %v1247
        %v1259 = vmul.f32 %v1253, %v1248
        %v1260 = vmul.f32 %v1253, %v1249
        %v1261 = vmul.f32 %v1253, %v1250
        %v1262 = vmul.f32 %v1253, %v1251
        %v1263 = vmul.f32 %v1253, %v1252
        %v1264 = vadd.f32 %v1220, %v1254
        %v1265 = vadd.f32 %v1221, %v1255
        %v1266 = vadd.f32 %v1222, %v1256
        %v1267 = vadd.f32 %v1223, %v1257
        %v1268 = vadd.f32 %v1224, %v1258
        %v1269 = vadd.f32 %v1225, %v1259
        %v1270 = vadd.f32 %v1226, %v1260
        %v1271 = vadd.f32 %v1227, %v1261
        %v1272 = vadd.f32 %v1228, %v1262
        %v1273 = vadd.f32 %v1229, %v1263
        %s1274 = sld [smem:[#allocation10 + $0x2]]
        %s1275 = sld [smem:[#allocation8 + $0x2]]
        %v1276 = vstv %s1275
        %v1277 = vadd.f32 %v903, %v1276
        %v1278 = vadd.f32 %v904, %v1276
        %v1279 = vadd.f32 %v905, %v1276
        %v1280 = vadd.f32 %v906, %v1276
        %v1281 = vadd.f32 %v907, %v1276
        %v1282 = vadd.f32 %v908, %v1276
        %v1283 = vadd.f32 %v909, %v1276
        %v1284 = vadd.f32 %v910, %v1276
        %v1285 = vadd.f32 %v911, %v1276
        %v1286 = vadd.f32 %v912, %v1276
        %v1287 = vmax.f32 %v1277, 0.0
        %v1288 = vmax.f32 %v1278, 0.0
        %v1289 = vmax.f32 %v1279, 0.0
        %v1290 = vmax.f32 %v1280, 0.0
        %v1291 = vmax.f32 %v1281, 0.0
        %v1292 = vmax.f32 %v1282, 0.0
        %v1293 = vmax.f32 %v1283, 0.0
        %v1294 = vmax.f32 %v1284, 0.0
        %v1295 = vmax.f32 %v1285, 0.0
        %v1296 = vmax.f32 %v1286, 0.0
        %v1297 = vstv %s1274
        %v1298 = vmul.f32 %v1297, %v1287
        %v1299 = vmul.f32 %v1297, %v1288
        %v1300 = vmul.f32 %v1297, %v1289
        %v1301 = vmul.f32 %v1297, %v1290
        %v1302 = vmul.f32 %v1297, %v1291
        %v1303 = vmul.f32 %v1297, %v1292
        %v1304 = vmul.f32 %v1297, %v1293
        %v1305 = vmul.f32 %v1297, %v1294
        %v1306 = vmul.f32 %v1297, %v1295
        %v1307 = vmul.f32 %v1297, %v1296
        %v1308 = vadd.f32 %v1264, %v1298
        %v1309 = vadd.f32 %v1265, %v1299
        %v1310 = vadd.f32 %v1266, %v1300
        %v1311 = vadd.f32 %v1267, %v1301
        %v1312 = vadd.f32 %v1268, %v1302
        %v1313 = vadd.f32 %v1269, %v1303
        %v1314 = vadd.f32 %v1270, %v1304
        %v1315 = vadd.f32 %v1271, %v1305
        %v1316 = vadd.f32 %v1272, %v1306
        %v1317 = vadd.f32 %v1273, %v1307
        %s1318 = sld [smem:[#allocation10 + $0x3]]
        %s1319 = sld [smem:[#allocation8 + $0x3]]
        %v1320 = vstv %s1319
        %v1321 = vadd.f32 %v1044, %v1320
        %v1322 = vadd.f32 %v1045, %v1320
        %v1323 = vadd.f32 %v1046, %v1320
        %v1324 = vadd.f32 %v1047, %v1320
        %v1325 = vadd.f32 %v1048, %v1320
        %v1326 = vadd.f32 %v1049, %v1320
        %v1327 = vadd.f32 %v1050, %v1320
        %v1328 = vadd.f32 %v1051, %v1320
        %v1329 = vadd.f32 %v1052, %v1320
        %v1330 = vadd.f32 %v1053, %v1320
        %v1331 = vmax.f32 %v1321, 0.0
        %v1332 = vmax.f32 %v1322, 0.0
        %v1333 = vmax.f32 %v1323, 0.0
        %v1334 = vmax.f32 %v1324, 0.0
        %v1335 = vmax.f32 %v1325, 0.0
        %v1336 = vmax.f32 %v1326, 0.0
        %v1337 = vmax.f32 %v1327, 0.0
        %v1338 = vmax.f32 %v1328, 0.0
        %v1339 = vmax.f32 %v1329, 0.0
        %v1340 = vmax.f32 %v1330, 0.0
        %v1341 = vstv %s1318
        %v1342 = vmul.f32 %v1341, %v1331
        %v1343 = vmul.f32 %v1341, %v1332
        %v1344 = vmul.f32 %v1341, %v1333
        %v1345 = vmul.f32 %v1341, %v1334
        %v1346 = vmul.f32 %v1341, %v1335
        %v1347 = vmul.f32 %v1341, %v1336
        %v1348 = vmul.f32 %v1341, %v1337
        %v1349 = vmul.f32 %v1341, %v1338
        %v1350 = vmul.f32 %v1341, %v1339
        %v1351 = vmul.f32 %v1341, %v1340
        %v1352 = vadd.f32 %v1308, %v1342
        %v1353 = vadd.f32 %v1309, %v1343
        %v1354 = vadd.f32 %v1310, %v1344
        %v1355 = vadd.f32 %v1311, %v1345
        %v1356 = vadd.f32 %v1312, %v1346
        %v1357 = vadd.f32 %v1313, %v1347
        %v1358 = vadd.f32 %v1314, %v1348
        %v1359 = vadd.f32 %v1315, %v1349
        %v1360 = vadd.f32 %v1316, %v1350
        %v1361 = vadd.f32 %v1317, %v1351
        %s1362 = sld [smem:[#allocation10 + $0x4]]
        %s1363 = sld [smem:[#allocation8 + $0x4]]
        %v1364 = vstv %s1363
        %v1365 = vadd.f32 %v1120, %v1364
        %v1366 = vadd.f32 %v1121, %v1364
        %v1367 = vadd.f32 %v1122, %v1364
        %v1368 = vadd.f32 %v1123, %v1364
        %v1369 = vadd.f32 %v1124, %v1364
        %v1370 = vadd.f32 %v1125, %v1364
        %v1371 = vadd.f32 %v1126, %v1364
        %v1372 = vadd.f32 %v1127, %v1364
        %v1373 = vadd.f32 %v1128, %v1364
        %v1374 = vadd.f32 %v1129, %v1364
        %v1375 = vmax.f32 %v1365, 0.0
        %v1376 = vmax.f32 %v1366, 0.0
        %v1377 = vmax.f32 %v1367, 0.0
        %v1378 = vmax.f32 %v1368, 0.0
        %v1379 = vmax.f32 %v1369, 0.0
        %v1380 = vmax.f32 %v1370, 0.0
        %v1381 = vmax.f32 %v1371, 0.0
        %v1382 = vmax.f32 %v1372, 0.0
        %v1383 = vmax.f32 %v1373, 0.0
        %v1384 = vmax.f32 %v1374, 0.0
        %v1385 = vstv %s1362
        %v1386 = vmul.f32 %v1385, %v1375
        %v1387 = vmul.f32 %v1385, %v1376
        %v1388 = vmul.f32 %v1385, %v1377
        %v1389 = vmul.f32 %v1385, %v1378
        %v1390 = vmul.f32 %v1385, %v1379
        %v1391 = vmul.f32 %v1385, %v1380
        %v1392 = vmul.f32 %v1385, %v1381
        %v1393 = vmul.f32 %v1385, %v1382
        %v1394 = vmul.f32 %v1385, %v1383
        %v1395 = vmul.f32 %v1385, %v1384
        %v1396 = vadd.f32 %v1352, %v1386
        %v1397 = vadd.f32 %v1353, %v1387
        %v1398 = vadd.f32 %v1354, %v1388
        %v1399 = vadd.f32 %v1355, %v1389
        %v1400 = vadd.f32 %v1356, %v1390
        %v1401 = vadd.f32 %v1357, %v1391
        %v1402 = vadd.f32 %v1358, %v1392
        %v1403 = vadd.f32 %v1359, %v1393
        %v1404 = vadd.f32 %v1360, %v1394
        %v1405 = vadd.f32 %v1361, %v1395
        %s1406 = sld [smem:[#allocation10 + $0x5]]
        %s1407 = sld [smem:[#allocation8 + $0x5]]
        %v1408 = vstv %s1407
        %v1409 = vadd.f32 %v1174, %v1408
        %v1410 = vadd.f32 %v1175, %v1408
        %v1411 = vadd.f32 %v1176, %v1408
        %v1412 = vadd.f32 %v1177, %v1408
        %v1413 = vadd.f32 %v1178, %v1408
        %v1414 = vadd.f32 %v1179, %v1408
        %v1415 = vadd.f32 %v1180, %v1408
        %v1416 = vadd.f32 %v1181, %v1408
        %v1417 = vadd.f32 %v1182, %v1408
        %v1418 = vadd.f32 %v1183, %v1408
        %v1419 = vmax.f32 %v1409, 0.0
        %v1420 = vmax.f32 %v1410, 0.0
        %v1421 = vmax.f32 %v1411, 0.0
        %v1422 = vmax.f32 %v1412, 0.0
        %v1423 = vmax.f32 %v1413, 0.0
        %v1424 = vmax.f32 %v1414, 0.0
        %v1425 = vmax.f32 %v1415, 0.0
        %v1426 = vmax.f32 %v1416, 0.0
        %v1427 = vmax.f32 %v1417, 0.0
        %v1428 = vmax.f32 %v1418, 0.0
        %v1429 = vstv %s1406
        %v1430 = vmul.f32 %v1429, %v1419
        %v1431 = vmul.f32 %v1429, %v1420
        %v1432 = vmul.f32 %v1429, %v1421
        %v1433 = vmul.f32 %v1429, %v1422
        %v1434 = vmul.f32 %v1429, %v1423
        %v1435 = vmul.f32 %v1429, %v1424
        %v1436 = vmul.f32 %v1429, %v1425
        %v1437 = vmul.f32 %v1429, %v1426
        %v1438 = vmul.f32 %v1429, %v1427
        %v1439 = vmul.f32 %v1429, %v1428
        %v1440 = vadd.f32 %v1396, %v1430
        %v1441 = vadd.f32 %v1397, %v1431
        %v1442 = vadd.f32 %v1398, %v1432
        %v1443 = vadd.f32 %v1399, %v1433
        %v1444 = vadd.f32 %v1400, %v1434
        %v1445 = vadd.f32 %v1401, %v1435
        %v1446 = vadd.f32 %v1402, %v1436
        %v1447 = vadd.f32 %v1403, %v1437
        %v1448 = vadd.f32 %v1404, %v1438
        %v1449 = vadd.f32 %v1405, %v1439
        %vm1450 = vcmask 130048
        %1451 = vst.msk [vmem:[%s299] sm:$0xff] %vm1450, %v1440
        %vm1452 = vcmask 125952
        %1453 = vst.msk [vmem:[%s299 + $0x8] sm:$0xf] %vm1452, %v1441
        %1454 = vst.msk [vmem:[%s299 + $0x10] sm:$0xff] %vm1450, %v1442
        %1455 = vst.msk [vmem:[%s299 + $0x18] sm:$0xf] %vm1452, %v1443
        %1456 = vst.msk [vmem:[%s299 + $0x20] sm:$0xff] %vm1450, %v1444
        %1457 = vst.msk [vmem:[%s299 + $0x28] sm:$0xf] %vm1452, %v1445
        %1458 = vst.msk [vmem:[%s299 + $0x30] sm:$0xff] %vm1450, %v1446
        %1459 = vst.msk [vmem:[%s299 + $0x38] sm:$0xf] %vm1452, %v1447
        %1460 = vst.msk [vmem:[%s299 + $0x40] sm:$0xff] %vm1450, %v1448
        %1461 = vst.msk [vmem:[%s299 + $0x48] sm:$0xf] %vm1452, %v1449
        %s1462 = sand.u32 %s159, 1
        %s1463 = scalar_lea.sflag [#allocation5], %s1462
        %s1464 = sand.u32 %s159, 1
        %s1465 = smul.addr %s1464, 80
        %s1466 = scalar_lea.vmem [#allocation11], %s1465
        // Predicated region
        $region57: #{tpu_custom_call.1} parent=39 // pred_check
          %p1467 = pneg %p169
        $region58: #{tpu_custom_call.1} parent=39 // pred_check_branch
          %1469 = sbr.rel (%p1467) target = $region60
        $region59: #{tpu_custom_call.1} parent=39 // pred_region
          %s1471 = ssub.s32 1280, 1280
          %1472 = vsyncadd %s1463, %s1471
          %s1473 = smul.addr %s29, 10
          %s1474 = sadd.s32 %s30, %s1473
          %s1475 = smul.addr %s1474, 128
          %s1476 = scalar_lea.hbm %s5, %s1475
          %s1477 = sshll.u32 %s1466, 4
          %s1478 = int_to_ptr.vmem [resolvable:$true] %s1477
          %1483 = dma.vmem_to_hbm [thread:$0]  %s1478, 1280, %s1476, %s1463, 128, 128, 8
        $region60: #{tpu_custom_call.1} parent=39 // pred_fallthru
          _
      $region40: #{tpu_custom_call.1} parent=5 // pred_fallthru
        _
      %p1484 = scmp.le.s32.totalorder 2, %s20
      // Predicated region
      $region61: #{tpu_custom_call.1} parent=5 // pred_check
        %p1485 = pneg %p1484
      $region62: #{tpu_custom_call.1} parent=5 // pred_check_branch
        %1487 = sbr.rel (%p1485) target = $region64
      $region63: #{tpu_custom_call.1} parent=5 // pred_region
        %s1488 = ssub.s32 %s20, 2
        // Predicated region
        $region65: #{tpu_custom_call.1} parent=63 // pred_check
          %p1489 = pneg %p175
        $region66: #{tpu_custom_call.1} parent=63 // pred_check_branch
          %1491 = sbr.rel (%p1489) target = $region68
        $region67: #{tpu_custom_call.1} parent=63 // pred_region
          %s1492 = sand.u32 %s160, 1
          %s1493 = scalar_lea.sflag [#allocation5], %s1492
          %s1494 = sand.u32 %s160, 1
          %s1495 = smul.addr %s1494, 80
          %s1496 = scalar_lea.vmem [#allocation11], %s1495
          %1497 = dma.done %s1493, 1280
        $region68: #{tpu_custom_call.1} parent=63 // pred_fallthru
          _
      $region64: #{tpu_custom_call.1} parent=5 // pred_fallthru
        _
    $region6: #{tpu_custom_call.1} parent=1 // loop_footer
      %s24 = sadd.s32 1, %s20
    $region7: #{tpu_custom_call.1} parent=1 // loop_footer_branch
      %19 = sbr.rel target = $region3
    $region8: #{tpu_custom_call.1} parent=1 // loop_exit
      _
    %1498 = vsyncpa [#allocation4], 1
    %s1499 = scalar_lea.sflag [#allocation4], 1
    %1500 = vsyncpa %s1499, 1
    %1501 = vsyncpa [#allocation5], 1
    %s1502 = scalar_lea.sflag [#allocation5], 1
    %1503 = vsyncpa %s1502, 1
    %1504 = vsyncpa [#allocation6], 1
    %s1505 = scalar_lea.sflag [#allocation6], 1
    %1506 = vsyncpa %s1505, 1
    %1507 = vsyncpa [#allocation9], 1

</llo_original>
